<compile_context>
chip_gen: v7x
topology: tpu7x:2x2x1
jax: 0.10.0
libtpu: 0.0.40
codegen_flags: <defaults>
</compile_context>

<pallas_src>
import jax
import jax.numpy as jnp
from jax.experimental import pallas as pl
from jax.experimental.pallas import tpu as pltpu

# ---------------- configuration (stand-in for `args`) ----------------
STEPS_AHEAD = 4          # args.steps_ahead
LSTM_HIDDEN = 32         # args.lstm_hidden_size
REG_HIDDEN = 32          # args.regressor_hidden_size
REG_HIDDEN_2 = 32        # args.regressor_hidden_size_2
N_REG_LAYERS = 2         # args.number_regressor_layers (kernel assumes 2)
N_FEATURES = 6           # n_contract_features
BATCH = 2
SEQ_LEN = 8
N_CONTRACTS = 2


# ---------------- weight slab layout (static, 8-row aligned) ----------------
def _compute_pack_layout():
    specs = [
        ("w_ih", N_FEATURES, 4 * LSTM_HIDDEN),
        ("w_hh", LSTM_HIDDEN, 4 * LSTM_HIDDEN),
        ("b_g", 1, 4 * LSTM_HIDDEN),
        ("w1_h", LSTM_HIDDEN, REG_HIDDEN),
        ("w1_r", 1, REG_HIDDEN),
        ("b1", 1, REG_HIDDEN),
        ("w2", REG_HIDDEN, REG_HIDDEN_2),
        ("b2", 1, REG_HIDDEN_2),
        ("w3", REG_HIDDEN_2, N_FEATURES),
        ("b3", 1, N_FEATURES),
        ("wfc", N_FEATURES, 1),
        ("bfc", 1, 1),
    ]
    offs = {}
    row = 0
    max_c = 0
    for name, r, c in specs:
        offs[name] = (row, r, c)
        row += ((r + 7) // 8) * 8          # keep every slice sublane-aligned
        max_c = max(max_c, c)
    lanes = ((max_c + 127) // 128) * 128
    return offs, row, lanes


_W_OFFS, _W_ROWS, _W_LANES = _compute_pack_layout()


def _pack_weights(params):
    """Pack all weights into one (rows, 128) f32 slab; fuse the two LSTM biases
    and split w1 into its lstm-hidden part and its r-scalar row."""
    H = LSTM_HIDDEN
    mats = {
        "w_ih": params["w_ih_t"],
        "w_hh": params["w_hh_t"],
        "b_g": params["b_ih"] + params["b_hh"],
        "w1_h": params["w1_t"][:H, :],
        "w1_r": params["w1_t"][H:H + 1, :],
        "b1": params["b1"],
        "w2": params["w2_t"],
        "b2": params["b2"],
        "w3": params["w3_t"],
        "b3": params["b3"],
        "wfc": params["wfc_t"],
        "bfc": params["bfc"],
    }
    slab = jnp.zeros((_W_ROWS, _W_LANES), jnp.float32)
    for name, (r0, nr, ncols) in _W_OFFS.items():
        slab = slab.at[r0:r0 + nr, 0:ncols].set(mats[name].astype(jnp.float32))
    return slab


# ---------------- kernel ----------------
def _model_kernel(x_ref, r_ref, w_ref, out_ref):
    B, T, NC, F = BATCH, SEQ_LEN, N_CONTRACTS, N_FEATURES
    H = LSTM_HIDDEN
    S = STEPS_AHEAD

    def wslice(name):
        row0, nrows, ncols = _W_OFFS[name]
        return w_ref[row0:row0 + nrows, 0:ncols]

    w_ih = wslice("w_ih")      # (F, 4H)
    w_hh = wslice("w_hh")      # (H, 4H)
    b_g = wslice("b_g")        # (1, 4H)  == b_ih + b_hh
    w1_h = wslice("w1_h")      # (H, RH)
    w1_r = wslice("w1_r")      # (1, RH)
    b1 = wslice("b1")          # (1, RH)
    w2 = wslice("w2")          # (RH, RH2)
    b2 = wslice("b2")          # (1, RH2)
    w3 = wslice("w3")          # (RH2, F)
    b3 = wslice("b3")          # (1, F)
    wfc = wslice("wfc")        # (F, 1)
    bfc = wslice("bfc")        # (1, 1)

    r_all = r_ref[...]         # (B*NC, S), rows ordered (b, contract)

    # Hoisted LSTM input projection of all original timesteps (one matmul):
    # x rows are ordered (b, t, contract) so per-b slices are (t, contract).
    x_all = x_ref[...]                                             # (B*T*NC, F)
    gx_all = (jnp.dot(x_all, w_ih, preferred_element_type=jnp.float32)
              + b_g)                                               # (B*T*NC,4H)

    # Per-batch projected-gates buffers (values, grown per step).
    pbuf = [gx_all[b * T * NC:(b + 1) * T * NC, :] for b in range(B)]

    outs = []
    for j in range(S):                               # static unroll over steps
        # LSTM recurrence over dim 0 (= data batch B) with the T window
        # timesteps as the LSTM batch, vectorized over contracts.
        # State rows ordered (t, contract) so the last-timestep hidden states
        # are the contiguous bottom NC rows of h.
        h = jnp.zeros((T * NC, H), jnp.float32)
        c = jnp.zeros((T * NC, H), jnp.float32)
        h_last = []
        for b in range(B):
            gates = (pbuf[b][j * NC:(j + T) * NC, :]
                     + jnp.dot(h, w_hh, preferred_element_type=jnp.float32))
            ig = jax.nn.sigmoid(gates[:, 0 * H:1 * H])
            fg = jax.nn.sigmoid(gates[:, 1 * H:2 * H])
            gg = jnp.tanh(gates[:, 2 * H:3 * H])
            og = jax.nn.sigmoid(gates[:, 3 * H:4 * H])
            c = fg * c + ig * gg
            h = og * jnp.tanh(c)
            h_last.append(h[(T - 1) * NC:, :])       # (NC, H), contiguous rows
        lstm_out = jnp.concatenate(h_last, axis=0)   # (B*NC, H), rows (b, c)

        # Regressor MLP; w1 is split so no (H+1)-wide lane concat is needed.
        r_j = r_all[:, j:j + 1]                                    # (B*NC, 1)
        a = jnp.maximum(
            jnp.dot(lstm_out, w1_h, preferred_element_type=jnp.float32)
            + r_j * w1_r + b1, 0.0)
        a = jnp.maximum(
            jnp.dot(a, w2, preferred_element_type=jnp.float32) + b2, 0.0)
        prediction = (jnp.dot(a, w3, preferred_element_type=jnp.float32)
                      + b3)                                        # (B*NC, F)

        # Output head: fc(relu(prediction)); accumulate as a value.
        out = (jnp.dot(jnp.maximum(prediction, 0.0), wfc,
                       preferred_element_type=jnp.float32) + bfc)  # (B*NC, 1)
        outs.append(out)

        # Incremental projection: only the newly appended prediction rows.
        if j + 1 < S:
            pred_g = (jnp.dot(prediction, w_ih,
                              preferred_element_type=jnp.float32)
                      + b_g)                                       # (B*NC, 4H)
            for b in range(B):
                pbuf[b] = jnp.concatenate(
                    [pbuf[b], pred_g[b * NC:(b + 1) * NC, :]], axis=0)

    # Single store of the whole (tiny) output after the step loop.
    out_ref[...] = jnp.concatenate(outs, axis=1)                   # (B*NC, S)


# ---------------- parameters ----------------
def init_params(key):
    """PyTorch-style uniform(-1/sqrt(fan), 1/sqrt(fan)) init.  Weights stored
    pre-transposed (in_features, out_features) so the kernel computes x @ W."""
    keys = jax.random.split(key, 12)
    H, F, RH, RH2 = LSTM_HIDDEN, N_FEATURES, REG_HIDDEN, REG_HIDDEN_2

    def unif(k, shape, fan_in):
        bound = 1.0 / (fan_in ** 0.5)
        return jax.random.uniform(k, shape, jnp.float32, -bound, bound)

    return {
        "w_ih_t": unif(keys[0], (F, 4 * H), H),
        "w_hh_t": unif(keys[1], (H, 4 * H), H),
        "b_ih":   unif(keys[2], (1, 4 * H), H),
        "b_hh":   unif(keys[3], (1, 4 * H), H),
        "w1_t": unif(keys[4], (H + 1, RH), H + 1),
        "b1":   unif(keys[5], (1, RH), H + 1),
        "w2_t": unif(keys[6], (RH, RH2), RH),
        "b2":   unif(keys[7], (1, RH2), RH),
        "w3_t": unif(keys[8], (RH2, F), RH2),
        "b3":   unif(keys[9], (1, F), RH2),
        "wfc_t": unif(keys[10], (F, 1), F),
        "bfc":   unif(keys[11], (1, 1), F),
    }


# ---------------- wrapper ----------------
@jax.jit
def model_forward(x, r, params):
    B, T, C = x.shape
    F = N_FEATURES
    NC = C // F
    S = STEPS_AHEAD

    # (B, T, NC*F) -> (B*T*NC, F): rows ordered (b, t, contract), a free
    # reshape (same flat ordering) so the kernel needs no transposes.
    x_flat = x.reshape(B * T * NC, F).astype(jnp.float32)

    # PyTorch `break` semantics: contract i contributes iff contracts 0..i are
    # all non-zero.  Computed here (cheap XLA reduce) instead of in-kernel.
    xr = x.reshape(B, T, NC, F)
    nonzero = jnp.any(xr != 0.0, axis=(0, 1, 3))              # (NC,)
    active = jnp.cumprod(nonzero.astype(jnp.float32))         # (NC,)

    # r replicated per contract with row ordering (b, contract).
    r_rep = jnp.repeat(r.astype(jnp.float32), NC, axis=0)     # (B*NC, S)

    slab = _pack_weights(params)                              # (_W_ROWS, 128)

    partial = pl.pallas_call(
        _model_kernel,
        out_shape=jax.ShapeDtypeStruct((B * NC, S), jnp.float32),
        grid_spec=pltpu.PrefetchScalarGridSpec(
            num_scalar_prefetch=0,
            grid=(1,),
            in_specs=[
                pl.BlockSpec((B * T * NC, F), lambda i: (0, 0)),
                pl.BlockSpec((B * NC, S), lambda i: (0, 0)),
                pl.BlockSpec((_W_ROWS, _W_LANES), lambda i: (0, 0)),
            ],
            out_specs=pl.BlockSpec((B * NC, S), lambda i: (0, 0)),
        ),
        compiler_params=pltpu.CompilerParams(
            dimension_semantics=("arbitrary",)),
    )(x_flat, r_rep, slab)

    # Mask out inactive contracts (break semantics) and sum contributions.
    pred = jnp.sum(partial.reshape(B, NC, S) * active[None, :, None], axis=1)
    return pred


# ---------------- pure-JAX reference (mirrors the PyTorch forward) -----------
def model_forward_ref(x, r, p):
    B, T, C = x.shape
    F, H = N_FEATURES, LSTM_HIDDEN
    pred = jnp.zeros((B, STEPS_AHEAD), jnp.float32)
    for i in range(C // F):
        contract = x[:, :, i * F:(i + 1) * F]
        if bool(jnp.all(contract == 0.0)):
            break
        for j in range(STEPS_AHEAD):
            h = jnp.zeros((T, H), jnp.float32)
            c = jnp.zeros((T, H), jnp.float32)
            hs = []
            for b in range(B):
                gates = (contract[b] @ p["w_ih_t"] + h @ p["w_hh_t"]
                         + p["b_ih"] + p["b_hh"])
                ig = jax.nn.sigmoid(gates[:, :H])
                fg = jax.nn.sigmoid(gates[:, H:2 * H])
                gg = jnp.tanh(gates[:, 2 * H:3 * H])
                og = jax.nn.sigmoid(gates[:, 3 * H:4 * H])
                c = fg * c + ig * gg
                h = og * jnp.tanh(c)
                hs.append(h[T - 1])
            lstm_out = jnp.stack(hs, axis=0)
            z = jnp.concatenate([lstm_out, r[:, j:j + 1]], axis=1)
            a = jnp.maximum(z @ p["w1_t"] + p["b1"], 0.0)
            a = jnp.maximum(a @ p["w2_t"] + p["b2"], 0.0)
            prediction = a @ p["w3_t"] + p["b3"]
            out = jnp.maximum(prediction, 0.0) @ p["wfc_t"] + p["bfc"]
            pred = pred.at[:, j].add(out[:, 0])
            contract = jnp.concatenate(
                [contract[:, 1:, :], prediction[:, None, :]], axis=1)
    return pred


if __name__ == "__main__":
    key = jax.random.PRNGKey(0)
    kx, kr, kp = jax.random.split(key, 3)
    x = jax.random.normal(kx, (BATCH, SEQ_LEN, N_CONTRACTS * N_FEATURES),
                          dtype=jnp.float32)
    r = jax.random.normal(kr, (BATCH, STEPS_AHEAD), dtype=jnp.float32)
    params = init_params(kp)

    pred = model_forward(x, r, params)
    jax.block_until_ready(pred)
    ref = model_forward_ref(x, r, params)
    assert pred.shape == (BATCH, STEPS_AHEAD)
    assert jnp.allclose(pred, ref, rtol=1e-3, atol=1e-3)

    # Also exercise the all-zero-contract `break` path.
    x_zero = x.at[:, :, N_FEATURES:2 * N_FEATURES].set(0.0)
    pred_z = model_forward(x_zero, r, params)
    jax.block_until_ready(pred_z)
    ref_z = model_forward_ref(x_zero, r, params)
    assert jnp.allclose(pred_z, ref_z, rtol=1e-3, atol=1e-3)

    print("KERNEL_OK")
</pallas_src>

<mosaic_0001>
module attributes {stable_mosaic.version = 11 : i64} {
  func.func @_model_kernel(%arg0: i32, %arg1: memref<32x6xf32, #tpu.memory_space<vmem>>, %arg2: memref<4x4xf32, #tpu.memory_space<vmem>>, %arg3: memref<192x128xf32, #tpu.memory_space<vmem>>, %arg4: memref<4x4xf32, #tpu.memory_space<vmem>>) attributes {dimension_semantics = [#tpu.dimension_semantics<arbitrary>], iteration_bounds = array<i64: 1>, scalar_prefetch = 0 : i64, scratch_operands = 0 : i64, tpu.core_type = #tpu.core_type<tc>, window_params = [{pipeline_mode = #tpu.pipeline_mode<synchronous>, transform_indices = @transform_0, window_bounds = array<i64: 32, 6>}, {pipeline_mode = #tpu.pipeline_mode<synchronous>, transform_indices = @transform_1, window_bounds = array<i64: 4, 4>}, {pipeline_mode = #tpu.pipeline_mode<synchronous>, transform_indices = @transform_2, window_bounds = array<i64: 192, 128>}, {pipeline_mode = #tpu.pipeline_mode<synchronous>, transform_indices = @transform_3, window_bounds = array<i64: 4, 4>}]} {
    %c0 = arith.constant 0 : index
    %c0_0 = arith.constant 0 : index
    %0 = vector.load %arg3[%c0, %c0_0] : memref<192x128xf32, #tpu.memory_space<vmem>>, vector<6x128xf32>
    %c8 = arith.constant 8 : index
    %c0_1 = arith.constant 0 : index
    %1 = vector.load %arg3[%c8, %c0_1] : memref<192x128xf32, #tpu.memory_space<vmem>>, vector<32x128xf32>
    %c40 = arith.constant 40 : index
    %c0_2 = arith.constant 0 : index
    %2 = vector.load %arg3[%c40, %c0_2] : memref<192x128xf32, #tpu.memory_space<vmem>>, vector<1x128xf32>
    %c48 = arith.constant 48 : index
    %c0_3 = arith.constant 0 : index
    %3 = vector.load %arg3[%c48, %c0_3] : memref<192x128xf32, #tpu.memory_space<vmem>>, vector<32x32xf32>
    %c80 = arith.constant 80 : index
    %c0_4 = arith.constant 0 : index
    %4 = vector.load %arg3[%c80, %c0_4] : memref<192x128xf32, #tpu.memory_space<vmem>>, vector<1x32xf32>
    %c88 = arith.constant 88 : index
    %c0_5 = arith.constant 0 : index
    %5 = vector.load %arg3[%c88, %c0_5] : memref<192x128xf32, #tpu.memory_space<vmem>>, vector<1x32xf32>
    %c96 = arith.constant 96 : index
    %c0_6 = arith.constant 0 : index
    %6 = vector.load %arg3[%c96, %c0_6] : memref<192x128xf32, #tpu.memory_space<vmem>>, vector<32x32xf32>
    %c128 = arith.constant 128 : index
    %c0_7 = arith.constant 0 : index
    %7 = vector.load %arg3[%c128, %c0_7] : memref<192x128xf32, #tpu.memory_space<vmem>>, vector<1x32xf32>
    %c136 = arith.constant 136 : index
    %c0_8 = arith.constant 0 : index
    %8 = vector.load %arg3[%c136, %c0_8] : memref<192x128xf32, #tpu.memory_space<vmem>>, vector<32x6xf32>
    %c168 = arith.constant 168 : index
    %c0_9 = arith.constant 0 : index
    %9 = vector.load %arg3[%c168, %c0_9] : memref<192x128xf32, #tpu.memory_space<vmem>>, vector<1x6xf32>
    %c176 = arith.constant 176 : index
    %c0_10 = arith.constant 0 : index
    %10 = vector.load %arg3[%c176, %c0_10] : memref<192x128xf32, #tpu.memory_space<vmem>>, vector<6x1xf32>
    %c184 = arith.constant 184 : index
    %c0_11 = arith.constant 0 : index
    %11 = vector.load %arg3[%c184, %c0_11] : memref<192x128xf32, #tpu.memory_space<vmem>>, vector<1x1xf32>
    %c0_12 = arith.constant 0 : index
    %c0_13 = arith.constant 0 : index
    %12 = vector.load %arg2[%c0_12, %c0_13] : memref<4x4xf32, #tpu.memory_space<vmem>>, vector<4x4xf32>
    %c0_14 = arith.constant 0 : index
    %c0_15 = arith.constant 0 : index
    %13 = vector.load %arg1[%c0_14, %c0_15] : memref<32x6xf32, #tpu.memory_space<vmem>>, vector<32x6xf32>
    %cst = arith.constant dense<0.000000e+00> : vector<32x128xf32>
    %14 = tpu.matmul %13, %0, %cst {dimension_numbers = #tpu.dot_dimension_numbers<[1], [0], [0], [1], [0, 0, 1, 1], [], []>} : vector<32x6xf32>, vector<6x128xf32>, vector<32x128xf32> -> vector<32x128xf32>
    %15 = vector.broadcast %2 : vector<1x128xf32> to vector<32x128xf32>
    %16 = arith.addf %14, %15 : vector<32x128xf32>
    %17 = vector.extract_strided_slice %16 {offsets = [0, 0], sizes = [16, 128], strides = [1, 1]} : vector<32x128xf32> to vector<16x128xf32>
    %18 = vector.extract_strided_slice %16 {offsets = [16, 0], sizes = [16, 128], strides = [1, 1]} : vector<32x128xf32> to vector<16x128xf32>
    %cst_16 = arith.constant 0.000000e+00 : f32
    %19 = vector.broadcast %cst_16 : f32 to vector<16x32xf32>
    %cst_17 = arith.constant 0.000000e+00 : f32
    %20 = vector.broadcast %cst_17 : f32 to vector<16x32xf32>
    %cst_18 = arith.constant dense<0.000000e+00> : vector<16x128xf32>
    %21 = tpu.matmul %19, %1, %cst_18 {dimension_numbers = #tpu.dot_dimension_numbers<[1], [0], [0], [1], [0, 0, 1, 1], [], []>} : vector<16x32xf32>, vector<32x128xf32>, vector<16x128xf32> -> vector<16x128xf32>
    %22 = arith.addf %17, %21 : vector<16x128xf32>
    %23 = vector.extract_strided_slice %22 {offsets = [0, 0], sizes = [16, 32], strides = [1, 1]} : vector<16x128xf32> to vector<16x32xf32>
    %24 = arith.negf %23 : vector<16x32xf32>
    %25 = math.exp %24 : vector<16x32xf32>
    %cst_19 = arith.constant 1.000000e+00 : f32
    %26 = vector.broadcast %cst_19 : f32 to vector<16x32xf32>
    %27 = arith.addf %26, %25 : vector<16x32xf32>
    %28 = arith.divf %26, %27 : vector<16x32xf32>
    %29 = vector.extract_strided_slice %22 {offsets = [0, 32], sizes = [16, 32], strides = [1, 1]} : vector<16x128xf32> to vector<16x32xf32>
    %30 = arith.negf %29 : vector<16x32xf32>
    %31 = math.exp %30 : vector<16x32xf32>
    %cst_20 = arith.constant 1.000000e+00 : f32
    %32 = vector.broadcast %cst_20 : f32 to vector<16x32xf32>
    %33 = arith.addf %32, %31 : vector<16x32xf32>
    %34 = arith.divf %32, %33 : vector<16x32xf32>
    %35 = vector.extract_strided_slice %22 {offsets = [0, 64], sizes = [16, 32], strides = [1, 1]} : vector<16x128xf32> to vector<16x32xf32>
    %36 = math.tanh %35 : vector<16x32xf32>
    %37 = vector.extract_strided_slice %22 {offsets = [0, 96], sizes = [16, 32], strides = [1, 1]} : vector<16x128xf32> to vector<16x32xf32>
    %38 = arith.negf %37 : vector<16x32xf32>
    %39 = math.exp %38 : vector<16x32xf32>
    %cst_21 = arith.constant 1.000000e+00 : f32
    %40 = vector.broadcast %cst_21 : f32 to vector<16x32xf32>
    %41 = arith.addf %40, %39 : vector<16x32xf32>
    %42 = arith.divf %40, %41 : vector<16x32xf32>
    %43 = arith.mulf %34, %20 : vector<16x32xf32>
    %44 = arith.mulf %28, %36 : vector<16x32xf32>
    %45 = arith.addf %43, %44 : vector<16x32xf32>
    %46 = math.tanh %45 : vector<16x32xf32>
    %47 = arith.mulf %42, %46 : vector<16x32xf32>
    %48 = vector.extract_strided_slice %47 {offsets = [14, 0], sizes = [2, 32], strides = [1, 1]} : vector<16x32xf32> to vector<2x32xf32>
    %cst_22 = arith.constant dense<0.000000e+00> : vector<16x128xf32>
    %49 = tpu.matmul %47, %1, %cst_22 {dimension_numbers = #tpu.dot_dimension_numbers<[1], [0], [0], [1], [0, 0, 1, 1], [], []>} : vector<16x32xf32>, vector<32x128xf32>, vector<16x128xf32> -> vector<16x128xf32>
    %50 = arith.addf %18, %49 : vector<16x128xf32>
    %51 = vector.extract_strided_slice %50 {offsets = [0, 0], sizes = [16, 32], strides = [1, 1]} : vector<16x128xf32> to vector<16x32xf32>
    %52 = arith.negf %51 : vector<16x32xf32>
    %53 = math.exp %52 : vector<16x32xf32>
    %cst_23 = arith.constant 1.000000e+00 : f32
    %54 = vector.broadcast %cst_23 : f32 to vector<16x32xf32>
    %55 = arith.addf %54, %53 : vector<16x32xf32>
    %56 = arith.divf %54, %55 : vector<16x32xf32>
    %57 = vector.extract_strided_slice %50 {offsets = [0, 32], sizes = [16, 32], strides = [1, 1]} : vector<16x128xf32> to vector<16x32xf32>
    %58 = arith.negf %57 : vector<16x32xf32>
    %59 = math.exp %58 : vector<16x32xf32>
    %cst_24 = arith.constant 1.000000e+00 : f32
    %60 = vector.broadcast %cst_24 : f32 to vector<16x32xf32>
    %61 = arith.addf %60, %59 : vector<16x32xf32>
    %62 = arith.divf %60, %61 : vector<16x32xf32>
    %63 = vector.extract_strided_slice %50 {offsets = [0, 64], sizes = [16, 32], strides = [1, 1]} : vector<16x128xf32> to vector<16x32xf32>
    %64 = math.tanh %63 : vector<16x32xf32>
    %65 = vector.extract_strided_slice %50 {offsets = [0, 96], sizes = [16, 32], strides = [1, 1]} : vector<16x128xf32> to vector<16x32xf32>
    %66 = arith.negf %65 : vector<16x32xf32>
    %67 = math.exp %66 : vector<16x32xf32>
    %cst_25 = arith.constant 1.000000e+00 : f32
    %68 = vector.broadcast %cst_25 : f32 to vector<16x32xf32>
    %69 = arith.addf %68, %67 : vector<16x32xf32>
    %70 = arith.divf %68, %69 : vector<16x32xf32>
    %71 = arith.mulf %62, %45 : vector<16x32xf32>
    %72 = arith.mulf %56, %64 : vector<16x32xf32>
    %73 = arith.addf %71, %72 : vector<16x32xf32>
    %74 = math.tanh %73 : vector<16x32xf32>
    %75 = arith.mulf %70, %74 : vector<16x32xf32>
    %76 = vector.extract_strided_slice %75 {offsets = [14, 0], sizes = [2, 32], strides = [1, 1]} : vector<16x32xf32> to vector<2x32xf32>
    %77 = tpu.concatenate %48, %76 in 0 : vector<2x32xf32>, vector<2x32xf32> -> vector<4x32xf32>
    %78 = vector.extract_strided_slice %12 {offsets = [0, 0], sizes = [4, 1], strides = [1, 1]} : vector<4x4xf32> to vector<4x1xf32>
    %cst_26 = arith.constant dense<0.000000e+00> : vector<4x32xf32>
    %79 = tpu.matmul %77, %3, %cst_26 {dimension_numbers = #tpu.dot_dimension_numbers<[1], [0], [0], [1], [0, 0, 1, 1], [], []>} : vector<4x32xf32>, vector<32x32xf32>, vector<4x32xf32> -> vector<4x32xf32>
    %80 = vector.broadcast %78 : vector<4x1xf32> to vector<4x32xf32>
    %81 = vector.broadcast %4 : vector<1x32xf32> to vector<4x32xf32>
    %82 = arith.mulf %80, %81 : vector<4x32xf32>
    %83 = arith.addf %79, %82 : vector<4x32xf32>
    %84 = vector.broadcast %5 : vector<1x32xf32> to vector<4x32xf32>
    %85 = arith.addf %83, %84 : vector<4x32xf32>
    %cst_27 = arith.constant 0.000000e+00 : f32
    %86 = vector.broadcast %cst_27 : f32 to vector<4x32xf32>
    %87 = arith.maximumf %85, %86 : vector<4x32xf32>
    %cst_28 = arith.constant dense<0.000000e+00> : vector<4x32xf32>
    %88 = tpu.matmul %87, %6, %cst_28 {dimension_numbers = #tpu.dot_dimension_numbers<[1], [0], [0], [1], [0, 0, 1, 1], [], []>} : vector<4x32xf32>, vector<32x32xf32>, vector<4x32xf32> -> vector<4x32xf32>
    %89 = vector.broadcast %7 : vector<1x32xf32> to vector<4x32xf32>
    %90 = arith.addf %88, %89 : vector<4x32xf32>
    %cst_29 = arith.constant 0.000000e+00 : f32
    %91 = vector.broadcast %cst_29 : f32 to vector<4x32xf32>
    %92 = arith.maximumf %90, %91 : vector<4x32xf32>
    %cst_30 = arith.constant dense<0.000000e+00> : vector<4x6xf32>
    %93 = tpu.matmul %92, %8, %cst_30 {dimension_numbers = #tpu.dot_dimension_numbers<[1], [0], [0], [1], [0, 0, 1, 1], [], []>} : vector<4x32xf32>, vector<32x6xf32>, vector<4x6xf32> -> vector<4x6xf32>
    %94 = vector.broadcast %9 : vector<1x6xf32> to vector<4x6xf32>
    %95 = arith.addf %93, %94 : vector<4x6xf32>
    %cst_31 = arith.constant 0.000000e+00 : f32
    %96 = vector.broadcast %cst_31 : f32 to vector<4x6xf32>
    %97 = arith.maximumf %95, %96 : vector<4x6xf32>
    %cst_32 = arith.constant dense<0.000000e+00> : vector<4x1xf32>
    %98 = tpu.matmul %97, %10, %cst_32 {dimension_numbers = #tpu.dot_dimension_numbers<[1], [0], [0], [1], [0, 0, 1, 1], [], []>} : vector<4x6xf32>, vector<6x1xf32>, vector<4x1xf32> -> vector<4x1xf32>
    %99 = vector.broadcast %11 : vector<1x1xf32> to vector<4x1xf32>
    %100 = arith.addf %98, %99 : vector<4x1xf32>
    %cst_33 = arith.constant dense<0.000000e+00> : vector<4x128xf32>
    %101 = tpu.matmul %95, %0, %cst_33 {dimension_numbers = #tpu.dot_dimension_numbers<[1], [0], [0], [1], [0, 0, 1, 1], [], []>} : vector<4x6xf32>, vector<6x128xf32>, vector<4x128xf32> -> vector<4x128xf32>
    %102 = vector.broadcast %2 : vector<1x128xf32> to vector<4x128xf32>
    %103 = arith.addf %101, %102 : vector<4x128xf32>
    %104 = vector.extract_strided_slice %103 {offsets = [0, 0], sizes = [2, 128], strides = [1, 1]} : vector<4x128xf32> to vector<2x128xf32>
    %105 = tpu.concatenate %17, %104 in 0 : vector<16x128xf32>, vector<2x128xf32> -> vector<18x128xf32>
    %106 = vector.extract_strided_slice %103 {offsets = [2, 0], sizes = [2, 128], strides = [1, 1]} : vector<4x128xf32> to vector<2x128xf32>
    %107 = tpu.concatenate %18, %106 in 0 : vector<16x128xf32>, vector<2x128xf32> -> vector<18x128xf32>
    %cst_34 = arith.constant 0.000000e+00 : f32
    %108 = vector.broadcast %cst_34 : f32 to vector<16x32xf32>
    %cst_35 = arith.constant 0.000000e+00 : f32
    %109 = vector.broadcast %cst_35 : f32 to vector<16x32xf32>
    %110 = vector.extract_strided_slice %105 {offsets = [2, 0], sizes = [16, 128], strides = [1, 1]} : vector<18x128xf32> to vector<16x128xf32>
    %cst_36 = arith.constant dense<0.000000e+00> : vector<16x128xf32>
    %111 = tpu.matmul %108, %1, %cst_36 {dimension_numbers = #tpu.dot_dimension_numbers<[1], [0], [0], [1], [0, 0, 1, 1], [], []>} : vector<16x32xf32>, vector<32x128xf32>, vector<16x128xf32> -> vector<16x128xf32>
    %112 = arith.addf %110, %111 : vector<16x128xf32>
    %113 = vector.extract_strided_slice %112 {offsets = [0, 0], sizes = [16, 32], strides = [1, 1]} : vector<16x128xf32> to vector<16x32xf32>
    %114 = arith.negf %113 : vector<16x32xf32>
    %115 = math.exp %114 : vector<16x32xf32>
    %cst_37 = arith.constant 1.000000e+00 : f32
    %116 = vector.broadcast %cst_37 : f32 to vector<16x32xf32>
    %117 = arith.addf %116, %115 : vector<16x32xf32>
    %118 = arith.divf %116, %117 : vector<16x32xf32>
    %119 = vector.extract_strided_slice %112 {offsets = [0, 32], sizes = [16, 32], strides = [1, 1]} : vector<16x128xf32> to vector<16x32xf32>
    %120 = arith.negf %119 : vector<16x32xf32>
    %121 = math.exp %120 : vector<16x32xf32>
    %cst_38 = arith.constant 1.000000e+00 : f32
    %122 = vector.broadcast %cst_38 : f32 to vector<16x32xf32>
    %123 = arith.addf %122, %121 : vector<16x32xf32>
    %124 = arith.divf %122, %123 : vector<16x32xf32>
    %125 = vector.extract_strided_slice %112 {offsets = [0, 64], sizes = [16, 32], strides = [1, 1]} : vector<16x128xf32> to vector<16x32xf32>
    %126 = math.tanh %125 : vector<16x32xf32>
    %127 = vector.extract_strided_slice %112 {offsets = [0, 96], sizes = [16, 32], strides = [1, 1]} : vector<16x128xf32> to vector<16x32xf32>
    %128 = arith.negf %127 : vector<16x32xf32>
    %129 = math.exp %128 : vector<16x32xf32>
    %cst_39 = arith.constant 1.000000e+00 : f32
    %130 = vector.broadcast %cst_39 : f32 to vector<16x32xf32>
    %131 = arith.addf %130, %129 : vector<16x32xf32>
    %132 = arith.divf %130, %131 : vector<16x32xf32>
    %133 = arith.mulf %124, %109 : vector<16x32xf32>
    %134 = arith.mulf %118, %126 : vector<16x32xf32>
    %135 = arith.addf %133, %134 : vector<16x32xf32>
    %136 = math.tanh %135 : vector<16x32xf32>
    %137 = arith.mulf %132, %136 : vector<16x32xf32>
    %138 = vector.extract_strided_slice %137 {offsets = [14, 0], sizes = [2, 32], strides = [1, 1]} : vector<16x32xf32> to vector<2x32xf32>
    %139 = vector.extract_strided_slice %107 {offsets = [2, 0], sizes = [16, 128], strides = [1, 1]} : vector<18x128xf32> to vector<16x128xf32>
    %cst_40 = arith.constant dense<0.000000e+00> : vector<16x128xf32>
    %140 = tpu.matmul %137, %1, %cst_40 {dimension_numbers = #tpu.dot_dimension_numbers<[1], [0], [0], [1], [0, 0, 1, 1], [], []>} : vector<16x32xf32>, vector<32x128xf32>, vector<16x128xf32> -> vector<16x128xf32>
    %141 = arith.addf %139, %140 : vector<16x128xf32>
    %142 = vector.extract_strided_slice %141 {offsets = [0, 0], sizes = [16, 32], strides = [1, 1]} : vector<16x128xf32> to vector<16x32xf32>
    %143 = arith.negf %142 : vector<16x32xf32>
    %144 = math.exp %143 : vector<16x32xf32>
    %cst_41 = arith.constant 1.000000e+00 : f32
    %145 = vector.broadcast %cst_41 : f32 to vector<16x32xf32>
    %146 = arith.addf %145, %144 : vector<16x32xf32>
    %147 = arith.divf %145, %146 : vector<16x32xf32>
    %148 = vector.extract_strided_slice %141 {offsets = [0, 32], sizes = [16, 32], strides = [1, 1]} : vector<16x128xf32> to vector<16x32xf32>
    %149 = arith.negf %148 : vector<16x32xf32>
    %150 = math.exp %149 : vector<16x32xf32>
    %cst_42 = arith.constant 1.000000e+00 : f32
    %151 = vector.broadcast %cst_42 : f32 to vector<16x32xf32>
    %152 = arith.addf %151, %150 : vector<16x32xf32>
    %153 = arith.divf %151, %152 : vector<16x32xf32>
    %154 = vector.extract_strided_slice %141 {offsets = [0, 64], sizes = [16, 32], strides = [1, 1]} : vector<16x128xf32> to vector<16x32xf32>
    %155 = math.tanh %154 : vector<16x32xf32>
    %156 = vector.extract_strided_slice %141 {offsets = [0, 96], sizes = [16, 32], strides = [1, 1]} : vector<16x128xf32> to vector<16x32xf32>
    %157 = arith.negf %156 : vector<16x32xf32>
    %158 = math.exp %157 : vector<16x32xf32>
    %cst_43 = arith.constant 1.000000e+00 : f32
    %159 = vector.broadcast %cst_43 : f32 to vector<16x32xf32>
    %160 = arith.addf %159, %158 : vector<16x32xf32>
    %161 = arith.divf %159, %160 : vector<16x32xf32>
    %162 = arith.mulf %153, %135 : vector<16x32xf32>
    %163 = arith.mulf %147, %155 : vector<16x32xf32>
    %164 = arith.addf %162, %163 : vector<16x32xf32>
    %165 = math.tanh %164 : vector<16x32xf32>
    %166 = arith.mulf %161, %165 : vector<16x32xf32>
    %167 = vector.extract_strided_slice %166 {offsets = [14, 0], sizes = [2, 32], strides = [1, 1]} : vector<16x32xf32> to vector<2x32xf32>
    %168 = tpu.concatenate %138, %167 in 0 : vector<2x32xf32>, vector<2x32xf32> -> vector<4x32xf32>
    %169 = vector.extract_strided_slice %12 {offsets = [0, 1], sizes = [4, 1], strides = [1, 1]} : vector<4x4xf32> to vector<4x1xf32>
    %cst_44 = arith.constant dense<0.000000e+00> : vector<4x32xf32>
    %170 = tpu.matmul %168, %3, %cst_44 {dimension_numbers = #tpu.dot_dimension_numbers<[1], [0], [0], [1], [0, 0, 1, 1], [], []>} : vector<4x32xf32>, vector<32x32xf32>, vector<4x32xf32> -> vector<4x32xf32>
    %171 = vector.broadcast %169 : vector<4x1xf32> to vector<4x32xf32>
    %172 = vector.broadcast %4 : vector<1x32xf32> to vector<4x32xf32>
    %173 = arith.mulf %171, %172 : vector<4x32xf32>
    %174 = arith.addf %170, %173 : vector<4x32xf32>
    %175 = vector.broadcast %5 : vector<1x32xf32> to vector<4x32xf32>
    %176 = arith.addf %174, %175 : vector<4x32xf32>
    %cst_45 = arith.constant 0.000000e+00 : f32
    %177 = vector.broadcast %cst_45 : f32 to vector<4x32xf32>
    %178 = arith.maximumf %176, %177 : vector<4x32xf32>
    %cst_46 = arith.constant dense<0.000000e+00> : vector<4x32xf32>
    %179 = tpu.matmul %178, %6, %cst_46 {dimension_numbers = #tpu.dot_dimension_numbers<[1], [0], [0], [1], [0, 0, 1, 1], [], []>} : vector<4x32xf32>, vector<32x32xf32>, vector<4x32xf32> -> vector<4x32xf32>
    %180 = vector.broadcast %7 : vector<1x32xf32> to vector<4x32xf32>
    %181 = arith.addf %179, %180 : vector<4x32xf32>
    %cst_47 = arith.constant 0.000000e+00 : f32
    %182 = vector.broadcast %cst_47 : f32 to vector<4x32xf32>
    %183 = arith.maximumf %181, %182 : vector<4x32xf32>
    %cst_48 = arith.constant dense<0.000000e+00> : vector<4x6xf32>
    %184 = tpu.matmul %183, %8, %cst_48 {dimension_numbers = #tpu.dot_dimension_numbers<[1], [0], [0], [1], [0, 0, 1, 1], [], []>} : vector<4x32xf32>, vector<32x6xf32>, vector<4x6xf32> -> vector<4x6xf32>
    %185 = vector.broadcast %9 : vector<1x6xf32> to vector<4x6xf32>
    %186 = arith.addf %184, %185 : vector<4x6xf32>
    %cst_49 = arith.constant 0.000000e+00 : f32
    %187 = vector.broadcast %cst_49 : f32 to vector<4x6xf32>
    %188 = arith.maximumf %186, %187 : vector<4x6xf32>
    %cst_50 = arith.constant dense<0.000000e+00> : vector<4x1xf32>
    %189 = tpu.matmul %188, %10, %cst_50 {dimension_numbers = #tpu.dot_dimension_numbers<[1], [0], [0], [1], [0, 0, 1, 1], [], []>} : vector<4x6xf32>, vector<6x1xf32>, vector<4x1xf32> -> vector<4x1xf32>
    %190 = vector.broadcast %11 : vector<1x1xf32> to vector<4x1xf32>
    %191 = arith.addf %189, %190 : vector<4x1xf32>
    %cst_51 = arith.constant dense<0.000000e+00> : vector<4x128xf32>
    %192 = tpu.matmul %186, %0, %cst_51 {dimension_numbers = #tpu.dot_dimension_numbers<[1], [0], [0], [1], [0, 0, 1, 1], [], []>} : vector<4x6xf32>, vector<6x128xf32>, vector<4x128xf32> -> vector<4x128xf32>
    %193 = vector.broadcast %2 : vector<1x128xf32> to vector<4x128xf32>
    %194 = arith.addf %192, %193 : vector<4x128xf32>
    %195 = vector.extract_strided_slice %194 {offsets = [0, 0], sizes = [2, 128], strides = [1, 1]} : vector<4x128xf32> to vector<2x128xf32>
    %196 = tpu.concatenate %105, %195 in 0 : vector<18x128xf32>, vector<2x128xf32> -> vector<20x128xf32>
    %197 = vector.extract_strided_slice %194 {offsets = [2, 0], sizes = [2, 128], strides = [1, 1]} : vector<4x128xf32> to vector<2x128xf32>
    %198 = tpu.concatenate %107, %197 in 0 : vector<18x128xf32>, vector<2x128xf32> -> vector<20x128xf32>
    %cst_52 = arith.constant 0.000000e+00 : f32
    %199 = vector.broadcast %cst_52 : f32 to vector<16x32xf32>
    %cst_53 = arith.constant 0.000000e+00 : f32
    %200 = vector.broadcast %cst_53 : f32 to vector<16x32xf32>
    %201 = vector.extract_strided_slice %196 {offsets = [4, 0], sizes = [16, 128], strides = [1, 1]} : vector<20x128xf32> to vector<16x128xf32>
    %cst_54 = arith.constant dense<0.000000e+00> : vector<16x128xf32>
    %202 = tpu.matmul %199, %1, %cst_54 {dimension_numbers = #tpu.dot_dimension_numbers<[1], [0], [0], [1], [0, 0, 1, 1], [], []>} : vector<16x32xf32>, vector<32x128xf32>, vector<16x128xf32> -> vector<16x128xf32>
    %203 = arith.addf %201, %202 : vector<16x128xf32>
    %204 = vector.extract_strided_slice %203 {offsets = [0, 0], sizes = [16, 32], strides = [1, 1]} : vector<16x128xf32> to vector<16x32xf32>
    %205 = arith.negf %204 : vector<16x32xf32>
    %206 = math.exp %205 : vector<16x32xf32>
    %cst_55 = arith.constant 1.000000e+00 : f32
    %207 = vector.broadcast %cst_55 : f32 to vector<16x32xf32>
    %208 = arith.addf %207, %206 : vector<16x32xf32>
    %209 = arith.divf %207, %208 : vector<16x32xf32>
    %210 = vector.extract_strided_slice %203 {offsets = [0, 32], sizes = [16, 32], strides = [1, 1]} : vector<16x128xf32> to vector<16x32xf32>
    %211 = arith.negf %210 : vector<16x32xf32>
    %212 = math.exp %211 : vector<16x32xf32>
    %cst_56 = arith.constant 1.000000e+00 : f32
    %213 = vector.broadcast %cst_56 : f32 to vector<16x32xf32>
    %214 = arith.addf %213, %212 : vector<16x32xf32>
    %215 = arith.divf %213, %214 : vector<16x32xf32>
    %216 = vector.extract_strided_slice %203 {offsets = [0, 64], sizes = [16, 32], strides = [1, 1]} : vector<16x128xf32> to vector<16x32xf32>
    %217 = math.tanh %216 : vector<16x32xf32>
    %218 = vector.extract_strided_slice %203 {offsets = [0, 96], sizes = [16, 32], strides = [1, 1]} : vector<16x128xf32> to vector<16x32xf32>
    %219 = arith.negf %218 : vector<16x32xf32>
    %220 = math.exp %219 : vector<16x32xf32>
    %cst_57 = arith.constant 1.000000e+00 : f32
    %221 = vector.broadcast %cst_57 : f32 to vector<16x32xf32>
    %222 = arith.addf %221, %220 : vector<16x32xf32>
    %223 = arith.divf %221, %222 : vector<16x32xf32>
    %224 = arith.mulf %215, %200 : vector<16x32xf32>
    %225 = arith.mulf %209, %217 : vector<16x32xf32>
    %226 = arith.addf %224, %225 : vector<16x32xf32>
    %227 = math.tanh %226 : vector<16x32xf32>
    %228 = arith.mulf %223, %227 : vector<16x32xf32>
    %229 = vector.extract_strided_slice %228 {offsets = [14, 0], sizes = [2, 32], strides = [1, 1]} : vector<16x32xf32> to vector<2x32xf32>
    %230 = vector.extract_strided_slice %198 {offsets = [4, 0], sizes = [16, 128], strides = [1, 1]} : vector<20x128xf32> to vector<16x128xf32>
    %cst_58 = arith.constant dense<0.000000e+00> : vector<16x128xf32>
    %231 = tpu.matmul %228, %1, %cst_58 {dimension_numbers = #tpu.dot_dimension_numbers<[1], [0], [0], [1], [0, 0, 1, 1], [], []>} : vector<16x32xf32>, vector<32x128xf32>, vector<16x128xf32> -> vector<16x128xf32>
    %232 = arith.addf %230, %231 : vector<16x128xf32>
    %233 = vector.extract_strided_slice %232 {offsets = [0, 0], sizes = [16, 32], strides = [1, 1]} : vector<16x128xf32> to vector<16x32xf32>
    %234 = arith.negf %233 : vector<16x32xf32>
    %235 = math.exp %234 : vector<16x32xf32>
    %cst_59 = arith.constant 1.000000e+00 : f32
    %236 = vector.broadcast %cst_59 : f32 to vector<16x32xf32>
    %237 = arith.addf %236, %235 : vector<16x32xf32>
    %238 = arith.divf %236, %237 : vector<16x32xf32>
    %239 = vector.extract_strided_slice %232 {offsets = [0, 32], sizes = [16, 32], strides = [1, 1]} : vector<16x128xf32> to vector<16x32xf32>
    %240 = arith.negf %239 : vector<16x32xf32>
    %241 = math.exp %240 : vector<16x32xf32>
    %cst_60 = arith.constant 1.000000e+00 : f32
    %242 = vector.broadcast %cst_60 : f32 to vector<16x32xf32>
    %243 = arith.addf %242, %241 : vector<16x32xf32>
    %244 = arith.divf %242, %243 : vector<16x32xf32>
    %245 = vector.extract_strided_slice %232 {offsets = [0, 64], sizes = [16, 32], strides = [1, 1]} : vector<16x128xf32> to vector<16x32xf32>
    %246 = math.tanh %245 : vector<16x32xf32>
    %247 = vector.extract_strided_slice %232 {offsets = [0, 96], sizes = [16, 32], strides = [1, 1]} : vector<16x128xf32> to vector<16x32xf32>
    %248 = arith.negf %247 : vector<16x32xf32>
    %249 = math.exp %248 : vector<16x32xf32>
    %cst_61 = arith.constant 1.000000e+00 : f32
    %250 = vector.broadcast %cst_61 : f32 to vector<16x32xf32>
    %251 = arith.addf %250, %249 : vector<16x32xf32>
    %252 = arith.divf %250, %251 : vector<16x32xf32>
    %253 = arith.mulf %244, %226 : vector<16x32xf32>
    %254 = arith.mulf %238, %246 : vector<16x32xf32>
    %255 = arith.addf %253, %254 : vector<16x32xf32>
    %256 = math.tanh %255 : vector<16x32xf32>
    %257 = arith.mulf %252, %256 : vector<16x32xf32>
    %258 = vector.extract_strided_slice %257 {offsets = [14, 0], sizes = [2, 32], strides = [1, 1]} : vector<16x32xf32> to vector<2x32xf32>
    %259 = tpu.concatenate %229, %258 in 0 : vector<2x32xf32>, vector<2x32xf32> -> vector<4x32xf32>
    %260 = vector.extract_strided_slice %12 {offsets = [0, 2], sizes = [4, 1], strides = [1, 1]} : vector<4x4xf32> to vector<4x1xf32>
    %cst_62 = arith.constant dense<0.000000e+00> : vector<4x32xf32>
    %261 = tpu.matmul %259, %3, %cst_62 {dimension_numbers = #tpu.dot_dimension_numbers<[1], [0], [0], [1], [0, 0, 1, 1], [], []>} : vector<4x32xf32>, vector<32x32xf32>, vector<4x32xf32> -> vector<4x32xf32>
    %262 = vector.broadcast %260 : vector<4x1xf32> to vector<4x32xf32>
    %263 = vector.broadcast %4 : vector<1x32xf32> to vector<4x32xf32>
    %264 = arith.mulf %262, %263 : vector<4x32xf32>
    %265 = arith.addf %261, %264 : vector<4x32xf32>
    %266 = vector.broadcast %5 : vector<1x32xf32> to vector<4x32xf32>
    %267 = arith.addf %265, %266 : vector<4x32xf32>
    %cst_63 = arith.constant 0.000000e+00 : f32
    %268 = vector.broadcast %cst_63 : f32 to vector<4x32xf32>
    %269 = arith.maximumf %267, %268 : vector<4x32xf32>
    %cst_64 = arith.constant dense<0.000000e+00> : vector<4x32xf32>
    %270 = tpu.matmul %269, %6, %cst_64 {dimension_numbers = #tpu.dot_dimension_numbers<[1], [0], [0], [1], [0, 0, 1, 1], [], []>} : vector<4x32xf32>, vector<32x32xf32>, vector<4x32xf32> -> vector<4x32xf32>
    %271 = vector.broadcast %7 : vector<1x32xf32> to vector<4x32xf32>
    %272 = arith.addf %270, %271 : vector<4x32xf32>
    %cst_65 = arith.constant 0.000000e+00 : f32
    %273 = vector.broadcast %cst_65 : f32 to vector<4x32xf32>
    %274 = arith.maximumf %272, %273 : vector<4x32xf32>
    %cst_66 = arith.constant dense<0.000000e+00> : vector<4x6xf32>
    %275 = tpu.matmul %274, %8, %cst_66 {dimension_numbers = #tpu.dot_dimension_numbers<[1], [0], [0], [1], [0, 0, 1, 1], [], []>} : vector<4x32xf32>, vector<32x6xf32>, vector<4x6xf32> -> vector<4x6xf32>
    %276 = vector.broadcast %9 : vector<1x6xf32> to vector<4x6xf32>
    %277 = arith.addf %275, %276 : vector<4x6xf32>
    %cst_67 = arith.constant 0.000000e+00 : f32
    %278 = vector.broadcast %cst_67 : f32 to vector<4x6xf32>
    %279 = arith.maximumf %277, %278 : vector<4x6xf32>
    %cst_68 = arith.constant dense<0.000000e+00> : vector<4x1xf32>
    %280 = tpu.matmul %279, %10, %cst_68 {dimension_numbers = #tpu.dot_dimension_numbers<[1], [0], [0], [1], [0, 0, 1, 1], [], []>} : vector<4x6xf32>, vector<6x1xf32>, vector<4x1xf32> -> vector<4x1xf32>
    %281 = vector.broadcast %11 : vector<1x1xf32> to vector<4x1xf32>
    %282 = arith.addf %280, %281 : vector<4x1xf32>
    %cst_69 = arith.constant dense<0.000000e+00> : vector<4x128xf32>
    %283 = tpu.matmul %277, %0, %cst_69 {dimension_numbers = #tpu.dot_dimension_numbers<[1], [0], [0], [1], [0, 0, 1, 1], [], []>} : vector<4x6xf32>, vector<6x128xf32>, vector<4x128xf32> -> vector<4x128xf32>
    %284 = vector.broadcast %2 : vector<1x128xf32> to vector<4x128xf32>
    %285 = arith.addf %283, %284 : vector<4x128xf32>
    %286 = vector.extract_strided_slice %285 {offsets = [0, 0], sizes = [2, 128], strides = [1, 1]} : vector<4x128xf32> to vector<2x128xf32>
    %287 = tpu.concatenate %196, %286 in 0 : vector<20x128xf32>, vector<2x128xf32> -> vector<22x128xf32>
    %288 = vector.extract_strided_slice %285 {offsets = [2, 0], sizes = [2, 128], strides = [1, 1]} : vector<4x128xf32> to vector<2x128xf32>
    %289 = tpu.concatenate %198, %288 in 0 : vector<20x128xf32>, vector<2x128xf32> -> vector<22x128xf32>
    %cst_70 = arith.constant 0.000000e+00 : f32
    %290 = vector.broadcast %cst_70 : f32 to vector<16x32xf32>
    %cst_71 = arith.constant 0.000000e+00 : f32
    %291 = vector.broadcast %cst_71 : f32 to vector<16x32xf32>
    %292 = vector.extract_strided_slice %287 {offsets = [6, 0], sizes = [16, 128], strides = [1, 1]} : vector<22x128xf32> to vector<16x128xf32>
    %cst_72 = arith.constant dense<0.000000e+00> : vector<16x128xf32>
    %293 = tpu.matmul %290, %1, %cst_72 {dimension_numbers = #tpu.dot_dimension_numbers<[1], [0], [0], [1], [0, 0, 1, 1], [], []>} : vector<16x32xf32>, vector<32x128xf32>, vector<16x128xf32> -> vector<16x128xf32>
    %294 = arith.addf %292, %293 : vector<16x128xf32>
    %295 = vector.extract_strided_slice %294 {offsets = [0, 0], sizes = [16, 32], strides = [1, 1]} : vector<16x128xf32> to vector<16x32xf32>
    %296 = arith.negf %295 : vector<16x32xf32>
    %297 = math.exp %296 : vector<16x32xf32>
    %cst_73 = arith.constant 1.000000e+00 : f32
    %298 = vector.broadcast %cst_73 : f32 to vector<16x32xf32>
    %299 = arith.addf %298, %297 : vector<16x32xf32>
    %300 = arith.divf %298, %299 : vector<16x32xf32>
    %301 = vector.extract_strided_slice %294 {offsets = [0, 32], sizes = [16, 32], strides = [1, 1]} : vector<16x128xf32> to vector<16x32xf32>
    %302 = arith.negf %301 : vector<16x32xf32>
    %303 = math.exp %302 : vector<16x32xf32>
    %cst_74 = arith.constant 1.000000e+00 : f32
    %304 = vector.broadcast %cst_74 : f32 to vector<16x32xf32>
    %305 = arith.addf %304, %303 : vector<16x32xf32>
    %306 = arith.divf %304, %305 : vector<16x32xf32>
    %307 = vector.extract_strided_slice %294 {offsets = [0, 64], sizes = [16, 32], strides = [1, 1]} : vector<16x128xf32> to vector<16x32xf32>
    %308 = math.tanh %307 : vector<16x32xf32>
    %309 = vector.extract_strided_slice %294 {offsets = [0, 96], sizes = [16, 32], strides = [1, 1]} : vector<16x128xf32> to vector<16x32xf32>
    %310 = arith.negf %309 : vector<16x32xf32>
    %311 = math.exp %310 : vector<16x32xf32>
    %cst_75 = arith.constant 1.000000e+00 : f32
    %312 = vector.broadcast %cst_75 : f32 to vector<16x32xf32>
    %313 = arith.addf %312, %311 : vector<16x32xf32>
    %314 = arith.divf %312, %313 : vector<16x32xf32>
    %315 = arith.mulf %306, %291 : vector<16x32xf32>
    %316 = arith.mulf %300, %308 : vector<16x32xf32>
    %317 = arith.addf %315, %316 : vector<16x32xf32>
    %318 = math.tanh %317 : vector<16x32xf32>
    %319 = arith.mulf %314, %318 : vector<16x32xf32>
    %320 = vector.extract_strided_slice %319 {offsets = [14, 0], sizes = [2, 32], strides = [1, 1]} : vector<16x32xf32> to vector<2x32xf32>
    %321 = vector.extract_strided_slice %289 {offsets = [6, 0], sizes = [16, 128], strides = [1, 1]} : vector<22x128xf32> to vector<16x128xf32>
    %cst_76 = arith.constant dense<0.000000e+00> : vector<16x128xf32>
    %322 = tpu.matmul %319, %1, %cst_76 {dimension_numbers = #tpu.dot_dimension_numbers<[1], [0], [0], [1], [0, 0, 1, 1], [], []>} : vector<16x32xf32>, vector<32x128xf32>, vector<16x128xf32> -> vector<16x128xf32>
    %323 = arith.addf %321, %322 : vector<16x128xf32>
    %324 = vector.extract_strided_slice %323 {offsets = [0, 0], sizes = [16, 32], strides = [1, 1]} : vector<16x128xf32> to vector<16x32xf32>
    %325 = arith.negf %324 : vector<16x32xf32>
    %326 = math.exp %325 : vector<16x32xf32>
    %cst_77 = arith.constant 1.000000e+00 : f32
    %327 = vector.broadcast %cst_77 : f32 to vector<16x32xf32>
    %328 = arith.addf %327, %326 : vector<16x32xf32>
    %329 = arith.divf %327, %328 : vector<16x32xf32>
    %330 = vector.extract_strided_slice %323 {offsets = [0, 32], sizes = [16, 32], strides = [1, 1]} : vector<16x128xf32> to vector<16x32xf32>
    %331 = arith.negf %330 : vector<16x32xf32>
    %332 = math.exp %331 : vector<16x32xf32>
    %cst_78 = arith.constant 1.000000e+00 : f32
    %333 = vector.broadcast %cst_78 : f32 to vector<16x32xf32>
    %334 = arith.addf %333, %332 : vector<16x32xf32>
    %335 = arith.divf %333, %334 : vector<16x32xf32>
    %336 = vector.extract_strided_slice %323 {offsets = [0, 64], sizes = [16, 32], strides = [1, 1]} : vector<16x128xf32> to vector<16x32xf32>
    %337 = math.tanh %336 : vector<16x32xf32>
    %338 = vector.extract_strided_slice %323 {offsets = [0, 96], sizes = [16, 32], strides = [1, 1]} : vector<16x128xf32> to vector<16x32xf32>
    %339 = arith.negf %338 : vector<16x32xf32>
    %340 = math.exp %339 : vector<16x32xf32>
    %cst_79 = arith.constant 1.000000e+00 : f32
    %341 = vector.broadcast %cst_79 : f32 to vector<16x32xf32>
    %342 = arith.addf %341, %340 : vector<16x32xf32>
    %343 = arith.divf %341, %342 : vector<16x32xf32>
    %344 = arith.mulf %335, %317 : vector<16x32xf32>
    %345 = arith.mulf %329, %337 : vector<16x32xf32>
    %346 = arith.addf %344, %345 : vector<16x32xf32>
    %347 = math.tanh %346 : vector<16x32xf32>
    %348 = arith.mulf %343, %347 : vector<16x32xf32>
    %349 = vector.extract_strided_slice %348 {offsets = [14, 0], sizes = [2, 32], strides = [1, 1]} : vector<16x32xf32> to vector<2x32xf32>
    %350 = tpu.concatenate %320, %349 in 0 : vector<2x32xf32>, vector<2x32xf32> -> vector<4x32xf32>
    %351 = vector.extract_strided_slice %12 {offsets = [0, 3], sizes = [4, 1], strides = [1, 1]} : vector<4x4xf32> to vector<4x1xf32>
    %cst_80 = arith.constant dense<0.000000e+00> : vector<4x32xf32>
    %352 = tpu.matmul %350, %3, %cst_80 {dimension_numbers = #tpu.dot_dimension_numbers<[1], [0], [0], [1], [0, 0, 1, 1], [], []>} : vector<4x32xf32>, vector<32x32xf32>, vector<4x32xf32> -> vector<4x32xf32>
    %353 = vector.broadcast %351 : vector<4x1xf32> to vector<4x32xf32>
    %354 = vector.broadcast %4 : vector<1x32xf32> to vector<4x32xf32>
    %355 = arith.mulf %353, %354 : vector<4x32xf32>
    %356 = arith.addf %352, %355 : vector<4x32xf32>
    %357 = vector.broadcast %5 : vector<1x32xf32> to vector<4x32xf32>
    %358 = arith.addf %356, %357 : vector<4x32xf32>
    %cst_81 = arith.constant 0.000000e+00 : f32
    %359 = vector.broadcast %cst_81 : f32 to vector<4x32xf32>
    %360 = arith.maximumf %358, %359 : vector<4x32xf32>
    %cst_82 = arith.constant dense<0.000000e+00> : vector<4x32xf32>
    %361 = tpu.matmul %360, %6, %cst_82 {dimension_numbers = #tpu.dot_dimension_numbers<[1], [0], [0], [1], [0, 0, 1, 1], [], []>} : vector<4x32xf32>, vector<32x32xf32>, vector<4x32xf32> -> vector<4x32xf32>
    %362 = vector.broadcast %7 : vector<1x32xf32> to vector<4x32xf32>
    %363 = arith.addf %361, %362 : vector<4x32xf32>
    %cst_83 = arith.constant 0.000000e+00 : f32
    %364 = vector.broadcast %cst_83 : f32 to vector<4x32xf32>
    %365 = arith.maximumf %363, %364 : vector<4x32xf32>
    %cst_84 = arith.constant dense<0.000000e+00> : vector<4x6xf32>
    %366 = tpu.matmul %365, %8, %cst_84 {dimension_numbers = #tpu.dot_dimension_numbers<[1], [0], [0], [1], [0, 0, 1, 1], [], []>} : vector<4x32xf32>, vector<32x6xf32>, vector<4x6xf32> -> vector<4x6xf32>
    %367 = vector.broadcast %9 : vector<1x6xf32> to vector<4x6xf32>
    %368 = arith.addf %366, %367 : vector<4x6xf32>
    %cst_85 = arith.constant 0.000000e+00 : f32
    %369 = vector.broadcast %cst_85 : f32 to vector<4x6xf32>
    %370 = arith.maximumf %368, %369 : vector<4x6xf32>
    %cst_86 = arith.constant dense<0.000000e+00> : vector<4x1xf32>
    %371 = tpu.matmul %370, %10, %cst_86 {dimension_numbers = #tpu.dot_dimension_numbers<[1], [0], [0], [1], [0, 0, 1, 1], [], []>} : vector<4x6xf32>, vector<6x1xf32>, vector<4x1xf32> -> vector<4x1xf32>
    %372 = vector.broadcast %11 : vector<1x1xf32> to vector<4x1xf32>
    %373 = arith.addf %371, %372 : vector<4x1xf32>
    %374 = tpu.concatenate %100, %191, %282, %373 in 1 : vector<4x1xf32>, vector<4x1xf32>, vector<4x1xf32>, vector<4x1xf32> -> vector<4x4xf32>
    %c0_87 = arith.constant 0 : index
    %c0_88 = arith.constant 0 : index
    %375 = vector.load %arg4[%c0_87, %c0_88] : memref<4x4xf32, #tpu.memory_space<vmem>>, vector<4x4xf32>
    tpu.vector_store %arg4[%c0_87, %c0_88], %374 {strides = array<i32>} : memref<4x4xf32, #tpu.memory_space<vmem>>, vector<4x4xf32>,
    return
  }
  func.func @transform_0(%arg0: i32) -> (i32, i32) {
    %c0_i32 = arith.constant 0 : i32
    %c0_i32_0 = arith.constant 0 : i32
    %c0_i32_1 = arith.constant 0 : i32
    return %c0_i32, %c0_i32_0 : i32, i32
  }
  func.func @transform_1(%arg0: i32) -> (i32, i32) {
    %c0_i32 = arith.constant 0 : i32
    %c0_i32_0 = arith.constant 0 : i32
    %c0_i32_1 = arith.constant 0 : i32
    return %c0_i32, %c0_i32_0 : i32, i32
  }
  func.func @transform_2(%arg0: i32) -> (i32, i32) {
    %c0_i32 = arith.constant 0 : i32
    %c0_i32_0 = arith.constant 0 : i32
    %c0_i32_1 = arith.constant 0 : i32
    return %c0_i32, %c0_i32_0 : i32, i32
  }
  func.func @transform_3(%arg0: i32) -> (i32, i32) {
    %c0_i32 = arith.constant 0 : i32
    %c0_i32_0 = arith.constant 0 : i32
    %c0_i32_1 = arith.constant 0 : i32
    return %c0_i32, %c0_i32_0 : i32, i32
  }
}

</mosaic_0001>

<llo_original>
// kernel: model_forward.1
$region0: #{model_forward.1}
  #allocation0 [shape = 'u32[]', space=smem, size = 0x4, offset = 0x4, fixed_abs, tag = 'smem constant byte address 0x4 - core index']
  #allocation1 [shape = 'u32[144,128]{1,0:T(1,128)}', space=vmem, size = 0x12000, scoped, tag = 'internal scratch']
  %s0 = inlined_call_operand.vmem [shape: f32[32,6], index: 0, kind: input, shape index: {}]
  %s1 = inlined_call_operand.vmem [shape: f32[4,4], index: 1, kind: input, shape index: {}]
  %s2 = inlined_call_operand.vmem [shape: f32[192,128], index: 2, kind: input, shape index: {}]
  %s3 = inlined_call_operand.vmem [shape: f32[4,4], index: 3, kind: output, shape index: {}]
  %s4 = sld [smem:[#allocation0]]
  $region22: #{model_forward.1} parent=0
    _
  %s6 = ssub.s32 1, %s4
  %s7 = scalar_select 0, %s6, %s4
  // Predicated region
  $region2: #{model_forward.1} parent=0 // pred_check
    _
  $region3: #{model_forward.1} parent=0 // pred_check_branch
    %9 = sbr.rel (0) target = $region5
  $region4: #{model_forward.1} parent=0 // pred_region
    _
  $region5: #{model_forward.1} parent=0 // pred_fallthru
    _
  // Predicated region
  $region6: #{model_forward.1} parent=0 // pred_check
    _
  $region7: #{model_forward.1} parent=0 // pred_check_branch
    %11 = sbr.rel (0) target = $region9
  $region8: #{model_forward.1} parent=0 // pred_region
    _
  $region9: #{model_forward.1} parent=0 // pred_fallthru
    _
  // Predicated region
  $region10: #{model_forward.1} parent=0 // pred_check
    _
  $region11: #{model_forward.1} parent=0 // pred_check_branch
    %13 = sbr.rel (0) target = $region13
  $region12: #{model_forward.1} parent=0 // pred_region
    _
  $region13: #{model_forward.1} parent=0 // pred_fallthru
    _
  %v14 = vld [vmem:[%s2] sm:$0x3f]
  %v15 = vld [vmem:[%s2 + $0x8] sm:$0xff]
  %v16 = vld [vmem:[%s2 + $0x10] sm:$0xff]
  %v17 = vld [vmem:[%s2 + $0x18] sm:$0xff]
  %v18 = vld [vmem:[%s2 + $0x20] sm:$0xff]
  %v19 = vld [vmem:[%s2 + $0x28] sm:$0x1]
  %v20 = vld [vmem:[%s2 + $0x30] sm:$0xff]
  %v21 = vld [vmem:[%s2 + $0x38] sm:$0xff]
  %v22 = vld [vmem:[%s2 + $0x40] sm:$0xff]
  %v23 = vld [vmem:[%s2 + $0x48] sm:$0xff]
  %v24 = vld [vmem:[%s2 + $0x50] sm:$0x1]
  %v25 = vld [vmem:[%s2 + $0x58] sm:$0x1]
  %v26 = vld [vmem:[%s2 + $0x60] sm:$0xff]
  %v27 = vld [vmem:[%s2 + $0x68] sm:$0xff]
  %v28 = vld [vmem:[%s2 + $0x70] sm:$0xff]
  %v29 = vld [vmem:[%s2 + $0x78] sm:$0xff]
  %v30 = vld [vmem:[%s2 + $0x80] sm:$0x1]
  %v31 = vld [vmem:[%s2 + $0x88] sm:$0xff]
  %v32 = vld [vmem:[%s2 + $0x90] sm:$0xff]
  %v33 = vld [vmem:[%s2 + $0x98] sm:$0xff]
  %v34 = vld [vmem:[%s2 + $0xa0] sm:$0xff]
  %v35 = vld [vmem:[%s2 + $0xa8] sm:$0x1]
  %v36 = vld [vmem:[%s2 + $0xb0] sm:$0x3f]
  %v37 = vld [vmem:[%s2 + $0xb8] sm:$0x1]
  %v38 = vld [vmem:[%s1] sm:$0xf]
  %v39 = vld [vmem:[%s0] sm:$0xff]
  %v40 = vld [vmem:[%s0 + $0x8] sm:$0xff]
  %v41 = vld [vmem:[%s0 + $0x10] sm:$0xff]
  %v42 = vld [vmem:[%s0 + $0x18] sm:$0xff]
  %v43 = vlaneseq
  %v44 = vshrl.u32 %v43, 7
  %v45 = vsub.s32 0, %v44
  %v46 = vrot.slane %v19, %v45
  %vm47 = vcmask 48128
  %v49 = vsel %vm47, %v39, 0
  %v52 = vsel %vm47, %v40, 0
  %v55 = vsel %vm47, %v41, 0
  %v58 = vsel %vm47, %v42, 0
  %vm60 = vcmask 1045504
  %v62 = vsel %vm60, %v14, 0
  %64 = vmatprep.subr.mxu0 0.0
  %65 = vmatpush1.msra.mxu0 %v62
  %66 = vmatprep.subr.mxu0 0.0
  %67 = vmatpush1.msra.mxu0 0.0
  %68 = vmatprep.subr.mxu0 0.0
  %69 = vmatpush1.msra.mxu0 0.0
  %70 = vmatprep.subr.mxu0 0.0
  %71 = vmatpush1.msra.mxu0 0.0
  %72 = vmatprep.subr.mxu0 0.0
  %73 = vmatpush1.msra.mxu0 0.0
  %74 = vmatprep.subr.mxu0 0.0
  %75 = vmatpush1.msra.mxu0 0.0
  %76 = vmatprep.subr.mxu0 0.0
  %77 = vmatpush1.msra.mxu0 0.0
  %78 = vmatprep.subr.mxu0 0.0
  %79 = vmatpush1.msra.mxu0 0.0
  %80 = vmatprep.subr.mxu0 0.0
  %81 = vmatpush1.msra.mxu0 0.0
  %82 = vmatprep.subr.mxu0 0.0
  %83 = vmatpush1.msra.mxu0 0.0
  %84 = vmatprep.subr.mxu0 0.0
  %85 = vmatpush1.msra.mxu0 0.0
  %86 = vmatprep.subr.mxu0 0.0
  %87 = vmatpush1.msra.mxu0 0.0
  %88 = vmatprep.subr.mxu0 0.0
  %89 = vmatpush1.msra.mxu0 0.0
  %90 = vmatprep.subr.mxu0 0.0
  %91 = vmatpush1.msra.mxu0 0.0
  %92 = vmatprep.subr.mxu0 0.0
  %93 = vmatpush1.msra.mxu0 0.0
  %94 = vmatprep.subr.mxu0 0.0
  %95 = vmatpush1.msra.mxu0 0.0
  %96 = vmatprep.subr.mxu0 0.0
  %97 = vmatpush1.msra.mxu0 0.0
  %98 = vmatprep.subr.mxu0 0.0
  %99 = vmatpush1.msra.mxu0 0.0
  %100 = vmatprep.subr.mxu0 0.0
  %101 = vmatpush1.msra.mxu0 0.0
  %102 = vmatprep.subr.mxu0 0.0
  %103 = vmatpush1.msra.mxu0 0.0
  %104 = vmatprep.subr.mxu0 0.0
  %105 = vmatpush1.msra.mxu0 0.0
  %106 = vmatprep.subr.mxu0 0.0
  %107 = vmatpush1.msra.mxu0 0.0
  %108 = vmatprep.subr.mxu0 0.0
  %109 = vmatpush1.msra.mxu0 0.0
  %110 = vmatprep.subr.mxu0 0.0
  %111 = vmatpush1.msra.mxu0 0.0
  %112 = vmatprep.subr.mxu0 0.0
  %113 = vmatpush1.msra.mxu0 0.0
  %114 = vmatprep.subr.mxu0 0.0
  %115 = vmatpush1.msra.mxu0 0.0
  %116 = vmatprep.subr.mxu0 0.0
  %117 = vmatpush1.msra.mxu0 0.0
  %118 = vmatprep.subr.mxu0 0.0
  %119 = vmatpush1.msra.mxu0 0.0
  %120 = vmatprep.subr.mxu0 0.0
  %121 = vmatpush1.msra.mxu0 0.0
  %122 = vmatprep.subr.mxu0 0.0
  %123 = vmatpush1.msra.mxu0 0.0
  %124 = vmatprep.subr.mxu0 0.0
  %125 = vmatpush1.msra.mxu0 0.0
  %126 = vmatprep.subr.mxu0 0.0
  %127 = vmatpush1.msra.mxu0 0.0
  %128 = vmatprep.mubr.f32.mxu0 0.0
  %129 = vmatmul.mubr.f32.gmra.mrb[0].mxu0 %v49
  %v130 = vpop.f32.mrb[0].mxu0
  %v131 = vadd.f32 %v46, %v130
  %v132 = vpop.f32.mrb[0].mxu0
  %133 = vmatprep.mubr.f32.mxu0 0.0
  %134 = vmatmul.mubr.f32.gmra.mrb[0].mxu0 %v52
  %v135 = vpop.f32.mrb[0].mxu0
  %v136 = vadd.f32 %v46, %v135
  %v137 = vpop.f32.mrb[0].mxu0
  %138 = vmatprep.mubr.f32.mxu0 0.0
  %139 = vmatmul.mubr.f32.gmra.mrb[0].mxu0 %v55
  %v140 = vpop.f32.mrb[0].mxu0
  %v141 = vpop.f32.mrb[0].mxu0
  %142 = vmatprep.mubr.f32.mxu0 0.0
  %143 = vmatmul.mubr.f32.gmra.mrb[0].mxu0 %v58
  %v144 = vpop.f32.mrb[0].mxu0
  %v145 = vadd.f32 %v46, %v144
  %v146 = vpop.f32.mrb[0].mxu0
  %147 = vdwg.mxu0
  %vm148 = vcmask 261120
  %v150 = vsel %vm148, 0.0, 0
  %152 = vmatprep.subr.mxu0 0.0
  %153 = vmatpush1.msra.mxu0 %v15
  %154 = vmatprep.subr.mxu0 0.0
  %155 = vmatpush1.msra.mxu0 %v16
  %156 = vmatprep.subr.mxu0 0.0
  %157 = vmatpush1.msra.mxu0 %v17
  %158 = vmatprep.subr.mxu0 0.0
  %159 = vmatpush1.msra.mxu0 %v18
  %160 = vmatprep.subr.mxu0 0.0
  %161 = vmatpush1.msra.mxu0 0.0
  %162 = vmatprep.subr.mxu0 0.0
  %163 = vmatpush1.msra.mxu0 0.0
  %164 = vmatprep.subr.mxu0 0.0
  %165 = vmatpush1.msra.mxu0 0.0
  %166 = vmatprep.subr.mxu0 0.0
  %167 = vmatpush1.msra.mxu0 0.0
  %168 = vmatprep.subr.mxu0 0.0
  %169 = vmatpush1.msra.mxu0 0.0
  %170 = vmatprep.subr.mxu0 0.0
  %171 = vmatpush1.msra.mxu0 0.0
  %172 = vmatprep.subr.mxu0 0.0
  %173 = vmatpush1.msra.mxu0 0.0
  %174 = vmatprep.subr.mxu0 0.0
  %175 = vmatpush1.msra.mxu0 0.0
  %176 = vmatprep.subr.mxu0 0.0
  %177 = vmatpush1.msra.mxu0 0.0
  %178 = vmatprep.subr.mxu0 0.0
  %179 = vmatpush1.msra.mxu0 0.0
  %180 = vmatprep.subr.mxu0 0.0
  %181 = vmatpush1.msra.mxu0 0.0
  %182 = vmatprep.subr.mxu0 0.0
  %183 = vmatpush1.msra.mxu0 0.0
  %184 = vmatprep.subr.mxu0 0.0
  %185 = vmatpush1.msra.mxu0 0.0
  %186 = vmatprep.subr.mxu0 0.0
  %187 = vmatpush1.msra.mxu0 0.0
  %188 = vmatprep.subr.mxu0 0.0
  %189 = vmatpush1.msra.mxu0 0.0
  %190 = vmatprep.subr.mxu0 0.0
  %191 = vmatpush1.msra.mxu0 0.0
  %192 = vmatprep.subr.mxu0 0.0
  %193 = vmatpush1.msra.mxu0 0.0
  %194 = vmatprep.subr.mxu0 0.0
  %195 = vmatpush1.msra.mxu0 0.0
  %196 = vmatprep.subr.mxu0 0.0
  %197 = vmatpush1.msra.mxu0 0.0
  %198 = vmatprep.subr.mxu0 0.0
  %199 = vmatpush1.msra.mxu0 0.0
  %200 = vmatprep.subr.mxu0 0.0
  %201 = vmatpush1.msra.mxu0 0.0
  %202 = vmatprep.subr.mxu0 0.0
  %203 = vmatpush1.msra.mxu0 0.0
  %204 = vmatprep.subr.mxu0 0.0
  %205 = vmatpush1.msra.mxu0 0.0
  %206 = vmatprep.subr.mxu0 0.0
  %207 = vmatpush1.msra.mxu0 0.0
  %208 = vmatprep.subr.mxu0 0.0
  %209 = vmatpush1.msra.mxu0 0.0
  %210 = vmatprep.subr.mxu0 0.0
  %211 = vmatpush1.msra.mxu0 0.0
  %212 = vmatprep.subr.mxu0 0.0
  %213 = vmatpush1.msra.mxu0 0.0
  %214 = vmatprep.subr.mxu0 0.0
  %215 = vmatpush1.msra.mxu0 0.0
  %216 = vmatprep.mubr.f32.mxu0 0.0
  %217 = vmatmul.mubr.f32.gmra.mrb[0].mxu0 %v150
  %v218 = vpop.f32.mrb[0].mxu0
  %v219 = vadd.f32 0.0, %v218
  %v220 = vpop.f32.mrb[0].mxu0
  %221 = vmatprep.mubr.f32.mxu0 0.0
  %222 = vmatmul.mubr.f32.gmra.mrb[0].mxu0 %v150
  %v223 = vpop.f32.mrb[0].mxu0
  %v224 = vadd.f32 0.0, %v223
  %v225 = vpop.f32.mrb[0].mxu0
  %226 = vdwg.mxu0
  %v227 = vadd.f32 %v131, %v219
  %v228 = vadd.f32 %v136, %v224
  %v229 = vxor.u32 %v227, 2147483648
  %v230 = vxor.u32 %v228, 2147483648
  %v231 = vmul.f32 %v229, 1.442695
  %v232 = vpow.pop %v231
  %v233 = vmul.f32 %v230, 1.442695
  %v234 = vpow.pop %v233
  %v235 = vadd.f32 %v232, 1.0
  %v236 = vadd.f32 %v234, 1.0
  %v237 = vrcp.pop %v235
  %v238 = vmul.f32 1.0, %v237
  %v239 = vrcp.pop %v236
  %v240 = vmul.f32 1.0, %v239
  %v241 = vtanh.pop %v227
  %v242 = vtanh.pop %v228
  %v243 = vmul.f32 %v238, 0.0
  %v244 = vmul.f32 %v240, 0.0
  %247 = vrot.lane.b32.xlu0 %v241, 64
  %v248 = vpop.permute.xlu0 %247
  %249 = vrot.lane.b32.xlu0 %v242, 64
  %v250 = vpop.permute.xlu0 %249
  %v253 = vmul.f32 %v238, %v248
  %v254 = vmul.f32 %v240, %v250
  %257 = vrot.lane.b32.xlu0 %v253, 32
  %v258 = vpop.permute.xlu0 %257
  %259 = vrot.lane.b32.xlu0 %v254, 32
  %v260 = vpop.permute.xlu0 %259
  %v263 = vadd.f32 %v243, %v258
  %v264 = vadd.f32 %v244, %v260
  %v265 = vtanh.pop %v263
  %v266 = vtanh.pop %v264
  %269 = vrot.lane.b32.xlu0 %v265, 64
  %v270 = vpop.permute.xlu0 %269
  %271 = vrot.lane.b32.xlu0 %v266, 64
  %v272 = vpop.permute.xlu0 %271
  %v275 = vmul.f32 %v238, %v270
  %v276 = vmul.f32 %v240, %v272
  %279 = vrot.lane.b32.xlu0 %v275, 32
  %v280 = vpop.permute.xlu0 %279
  %281 = vrot.lane.b32.xlu0 %v276, 32
  %v282 = vpop.permute.xlu0 %281
  %v283 = vsel %vm148, %v280, 0
  %v285 = vsel %vm148, %v282, 0
  %287 = vmatprep.subr.mxu0 0.0
  %288 = vmatpush1.msra.mxu0 %v15
  %289 = vmatprep.subr.mxu0 0.0
  %290 = vmatpush1.msra.mxu0 %v16
  %291 = vmatprep.subr.mxu0 0.0
  %292 = vmatpush1.msra.mxu0 %v17
  %293 = vmatprep.subr.mxu0 0.0
  %294 = vmatpush1.msra.mxu0 %v18
  %295 = vmatprep.subr.mxu0 0.0
  %296 = vmatpush1.msra.mxu0 0.0
  %297 = vmatprep.subr.mxu0 0.0
  %298 = vmatpush1.msra.mxu0 0.0
  %299 = vmatprep.subr.mxu0 0.0
  %300 = vmatpush1.msra.mxu0 0.0
  %301 = vmatprep.subr.mxu0 0.0
  %302 = vmatpush1.msra.mxu0 0.0
  %303 = vmatprep.subr.mxu0 0.0
  %304 = vmatpush1.msra.mxu0 0.0
  %305 = vmatprep.subr.mxu0 0.0
  %306 = vmatpush1.msra.mxu0 0.0
  %307 = vmatprep.subr.mxu0 0.0
  %308 = vmatpush1.msra.mxu0 0.0
  %309 = vmatprep.subr.mxu0 0.0
  %310 = vmatpush1.msra.mxu0 0.0
  %311 = vmatprep.subr.mxu0 0.0
  %312 = vmatpush1.msra.mxu0 0.0
  %313 = vmatprep.subr.mxu0 0.0
  %314 = vmatpush1.msra.mxu0 0.0
  %315 = vmatprep.subr.mxu0 0.0
  %316 = vmatpush1.msra.mxu0 0.0
  %317 = vmatprep.subr.mxu0 0.0
  %318 = vmatpush1.msra.mxu0 0.0
  %319 = vmatprep.subr.mxu0 0.0
  %320 = vmatpush1.msra.mxu0 0.0
  %321 = vmatprep.subr.mxu0 0.0
  %322 = vmatpush1.msra.mxu0 0.0
  %323 = vmatprep.subr.mxu0 0.0
  %324 = vmatpush1.msra.mxu0 0.0
  %325 = vmatprep.subr.mxu0 0.0
  %326 = vmatpush1.msra.mxu0 0.0
  %327 = vmatprep.subr.mxu0 0.0
  %328 = vmatpush1.msra.mxu0 0.0
  %329 = vmatprep.subr.mxu0 0.0
  %330 = vmatpush1.msra.mxu0 0.0
  %331 = vmatprep.subr.mxu0 0.0
  %332 = vmatpush1.msra.mxu0 0.0
  %333 = vmatprep.subr.mxu0 0.0
  %334 = vmatpush1.msra.mxu0 0.0
  %335 = vmatprep.subr.mxu0 0.0
  %336 = vmatpush1.msra.mxu0 0.0
  %337 = vmatprep.subr.mxu0 0.0
  %338 = vmatpush1.msra.mxu0 0.0
  %339 = vmatprep.subr.mxu0 0.0
  %340 = vmatpush1.msra.mxu0 0.0
  %341 = vmatprep.subr.mxu0 0.0
  %342 = vmatpush1.msra.mxu0 0.0
  %343 = vmatprep.subr.mxu0 0.0
  %344 = vmatpush1.msra.mxu0 0.0
  %345 = vmatprep.subr.mxu0 0.0
  %346 = vmatpush1.msra.mxu0 0.0
  %347 = vmatprep.subr.mxu0 0.0
  %348 = vmatpush1.msra.mxu0 0.0
  %349 = vmatprep.subr.mxu0 0.0
  %350 = vmatpush1.msra.mxu0 0.0
  %351 = vmatprep.mubr.f32.mxu0 0.0
  %352 = vmatmul.mubr.f32.gmra.mrb[0].mxu0 %v283
  %v353 = vpop.f32.mrb[0].mxu0
  %v354 = vpop.f32.mrb[0].mxu0
  %355 = vmatprep.mubr.f32.mxu0 0.0
  %356 = vmatmul.mubr.f32.gmra.mrb[0].mxu0 %v285
  %v357 = vpop.f32.mrb[0].mxu0
  %v358 = vadd.f32 0.0, %v357
  %v359 = vpop.f32.mrb[0].mxu0
  %360 = vdwg.mxu0
  %v361 = vadd.f32 %v145, %v358
  %v362 = vxor.u32 %v361, 2147483648
  %v363 = vmul.f32 %v362, 1.442695
  %v364 = vpow.pop %v363
  %v365 = vadd.f32 %v364, 1.0
  %v366 = vrcp.pop %v365
  %v367 = vmul.f32 1.0, %v366
  %v368 = vtanh.pop %v361
  %v369 = vmul.f32 %v367, %v264
  %371 = vrot.lane.b32.xlu0 %v368, 64
  %v372 = vpop.permute.xlu0 %371
  %v374 = vmul.f32 %v367, %v372
  %376 = vrot.lane.b32.xlu0 %v374, 32
  %v377 = vpop.permute.xlu0 %376
  %v379 = vadd.f32 %v369, %v377
  %v380 = vtanh.pop %v379
  %382 = vrot.lane.b32.xlu0 %v380, 64
  %v383 = vpop.permute.xlu0 %382
  %v385 = vmul.f32 %v367, %v383
  %v386 = vrot.slane %v276, 6
  %v389 = vrot.slane %v385, 4
  %vm391 = vcmask 1041408
  %v392 = vsel %vm391, %v386, %v389
  %394 = vset.pattern.permute.xlu0 0
  %395 = vperm.xlu0 %394, %v38
  %v396 = vpop.permute.xlu0 %395
  %v398 = vlaneseq
  %v399 = vshrl.u32 %v398, 7
  %v400 = vsub.s32 0, %v399
  %v401 = vrot.slane %v24, %v400
  %v402 = vmul.f32 %v396, %v401
  %404 = vrot.lane.b32.xlu0 %v392, 32
  %v405 = vpop.permute.xlu0 %404
  %v406 = vsel %vm148, %v405, 0
  %408 = vmatprep.subr.mxu0 0.0
  %409 = vmatpush1.msra.mxu0 %v20
  %410 = vmatprep.subr.mxu0 0.0
  %411 = vmatpush1.msra.mxu0 %v21
  %412 = vmatprep.subr.mxu0 0.0
  %413 = vmatpush1.msra.mxu0 %v22
  %414 = vmatprep.subr.mxu0 0.0
  %415 = vmatpush1.msra.mxu0 %v23
  %416 = vmatprep.subr.mxu0 0.0
  %417 = vmatpush1.msra.mxu0 0.0
  %418 = vmatprep.subr.mxu0 0.0
  %419 = vmatpush1.msra.mxu0 0.0
  %420 = vmatprep.subr.mxu0 0.0
  %421 = vmatpush1.msra.mxu0 0.0
  %422 = vmatprep.subr.mxu0 0.0
  %423 = vmatpush1.msra.mxu0 0.0
  %424 = vmatprep.subr.mxu0 0.0
  %425 = vmatpush1.msra.mxu0 0.0
  %426 = vmatprep.subr.mxu0 0.0
  %427 = vmatpush1.msra.mxu0 0.0
  %428 = vmatprep.subr.mxu0 0.0
  %429 = vmatpush1.msra.mxu0 0.0
  %430 = vmatprep.subr.mxu0 0.0
  %431 = vmatpush1.msra.mxu0 0.0
  %432 = vmatprep.subr.mxu0 0.0
  %433 = vmatpush1.msra.mxu0 0.0
  %434 = vmatprep.subr.mxu0 0.0
  %435 = vmatpush1.msra.mxu0 0.0
  %436 = vmatprep.subr.mxu0 0.0
  %437 = vmatpush1.msra.mxu0 0.0
  %438 = vmatprep.subr.mxu0 0.0
  %439 = vmatpush1.msra.mxu0 0.0
  %440 = vmatprep.subr.mxu0 0.0
  %441 = vmatpush1.msra.mxu0 0.0
  %442 = vmatprep.subr.mxu0 0.0
  %443 = vmatpush1.msra.mxu0 0.0
  %444 = vmatprep.subr.mxu0 0.0
  %445 = vmatpush1.msra.mxu0 0.0
  %446 = vmatprep.subr.mxu0 0.0
  %447 = vmatpush1.msra.mxu0 0.0
  %448 = vmatprep.subr.mxu0 0.0
  %449 = vmatpush1.msra.mxu0 0.0
  %450 = vmatprep.subr.mxu0 0.0
  %451 = vmatpush1.msra.mxu0 0.0
  %452 = vmatprep.subr.mxu0 0.0
  %453 = vmatpush1.msra.mxu0 0.0
  %454 = vmatprep.subr.mxu0 0.0
  %455 = vmatpush1.msra.mxu0 0.0
  %456 = vmatprep.subr.mxu0 0.0
  %457 = vmatpush1.msra.mxu0 0.0
  %458 = vmatprep.subr.mxu0 0.0
  %459 = vmatpush1.msra.mxu0 0.0
  %460 = vmatprep.subr.mxu0 0.0
  %461 = vmatpush1.msra.mxu0 0.0
  %462 = vmatprep.subr.mxu0 0.0
  %463 = vmatpush1.msra.mxu0 0.0
  %464 = vmatprep.subr.mxu0 0.0
  %465 = vmatpush1.msra.mxu0 0.0
  %466 = vmatprep.subr.mxu0 0.0
  %467 = vmatpush1.msra.mxu0 0.0
  %468 = vmatprep.subr.mxu0 0.0
  %469 = vmatpush1.msra.mxu0 0.0
  %470 = vmatprep.subr.mxu0 0.0
  %471 = vmatpush1.msra.mxu0 0.0
  %472 = vmatprep.mubr.f32.mxu0 0.0
  %473 = vmatmul.mubr.f32.gmra.mrb[0].mxu0 %v406
  %v474 = vpop.f32.mrb[0].mxu0
  %v475 = vadd.f32 %v402, %v474
  %v476 = vpop.f32.mrb[0].mxu0
  %477 = vdwg.mxu0
  %v478 = vlaneseq
  %v479 = vshrl.u32 %v478, 7
  %v480 = vsub.s32 0, %v479
  %v481 = vrot.slane %v25, %v480
  %v482 = vadd.f32 %v475, %v481
  %v483 = vmax.f32 %v482, 0.0
  %v484 = vlaneseq
  %v485 = vshrl.u32 %v484, 7
  %v486 = vsub.s32 0, %v485
  %v487 = vrot.slane %v30, %v486
  %v489 = vsel %vm148, %v483, 0
  %491 = vmatprep.subr.mxu0 0.0
  %492 = vmatpush1.msra.mxu0 %v26
  %493 = vmatprep.subr.mxu0 0.0
  %494 = vmatpush1.msra.mxu0 %v27
  %495 = vmatprep.subr.mxu0 0.0
  %496 = vmatpush1.msra.mxu0 %v28
  %497 = vmatprep.subr.mxu0 0.0
  %498 = vmatpush1.msra.mxu0 %v29
  %499 = vmatprep.subr.mxu0 0.0
  %500 = vmatpush1.msra.mxu0 0.0
  %501 = vmatprep.subr.mxu0 0.0
  %502 = vmatpush1.msra.mxu0 0.0
  %503 = vmatprep.subr.mxu0 0.0
  %504 = vmatpush1.msra.mxu0 0.0
  %505 = vmatprep.subr.mxu0 0.0
  %506 = vmatpush1.msra.mxu0 0.0
  %507 = vmatprep.subr.mxu0 0.0
  %508 = vmatpush1.msra.mxu0 0.0
  %509 = vmatprep.subr.mxu0 0.0
  %510 = vmatpush1.msra.mxu0 0.0
  %511 = vmatprep.subr.mxu0 0.0
  %512 = vmatpush1.msra.mxu0 0.0
  %513 = vmatprep.subr.mxu0 0.0
  %514 = vmatpush1.msra.mxu0 0.0
  %515 = vmatprep.subr.mxu0 0.0
  %516 = vmatpush1.msra.mxu0 0.0
  %517 = vmatprep.subr.mxu0 0.0
  %518 = vmatpush1.msra.mxu0 0.0
  %519 = vmatprep.subr.mxu0 0.0
  %520 = vmatpush1.msra.mxu0 0.0
  %521 = vmatprep.subr.mxu0 0.0
  %522 = vmatpush1.msra.mxu0 0.0
  %523 = vmatprep.subr.mxu0 0.0
  %524 = vmatpush1.msra.mxu0 0.0
  %525 = vmatprep.subr.mxu0 0.0
  %526 = vmatpush1.msra.mxu0 0.0
  %527 = vmatprep.subr.mxu0 0.0
  %528 = vmatpush1.msra.mxu0 0.0
  %529 = vmatprep.subr.mxu0 0.0
  %530 = vmatpush1.msra.mxu0 0.0
  %531 = vmatprep.subr.mxu0 0.0
  %532 = vmatpush1.msra.mxu0 0.0
  %533 = vmatprep.subr.mxu0 0.0
  %534 = vmatpush1.msra.mxu0 0.0
  %535 = vmatprep.subr.mxu0 0.0
  %536 = vmatpush1.msra.mxu0 0.0
  %537 = vmatprep.subr.mxu0 0.0
  %538 = vmatpush1.msra.mxu0 0.0
  %539 = vmatprep.subr.mxu0 0.0
  %540 = vmatpush1.msra.mxu0 0.0
  %541 = vmatprep.subr.mxu0 0.0
  %542 = vmatpush1.msra.mxu0 0.0
  %543 = vmatprep.subr.mxu0 0.0
  %544 = vmatpush1.msra.mxu0 0.0
  %545 = vmatprep.subr.mxu0 0.0
  %546 = vmatpush1.msra.mxu0 0.0
  %547 = vmatprep.subr.mxu0 0.0
  %548 = vmatpush1.msra.mxu0 0.0
  %549 = vmatprep.subr.mxu0 0.0
  %550 = vmatpush1.msra.mxu0 0.0
  %551 = vmatprep.subr.mxu0 0.0
  %552 = vmatpush1.msra.mxu0 0.0
  %553 = vmatprep.subr.mxu0 0.0
  %554 = vmatpush1.msra.mxu0 0.0
  %555 = vmatprep.mubr.f32.mxu0 0.0
  %556 = vmatmul.mubr.f32.gmra.mrb[0].mxu0 %v489
  %v557 = vpop.f32.mrb[0].mxu0
  %v558 = vadd.f32 %v487, %v557
  %v559 = vpop.f32.mrb[0].mxu0
  %560 = vdwg.mxu0
  %v561 = vmax.f32 %v558, 0.0
  %v562 = vlaneseq
  %v563 = vshrl.u32 %v562, 7
  %v564 = vsub.s32 0, %v563
  %v565 = vrot.slane %v35, %v564
  %v567 = vsel %vm148, %v561, 0
  %569 = vmatprep.subr.mxu0 0.0
  %570 = vmatpush1.msra.mxu0 %v31
  %571 = vmatprep.subr.mxu0 0.0
  %572 = vmatpush1.msra.mxu0 %v32
  %573 = vmatprep.subr.mxu0 0.0
  %574 = vmatpush1.msra.mxu0 %v33
  %575 = vmatprep.subr.mxu0 0.0
  %576 = vmatpush1.msra.mxu0 %v34
  %577 = vmatprep.subr.mxu0 0.0
  %578 = vmatpush1.msra.mxu0 0.0
  %579 = vmatprep.subr.mxu0 0.0
  %580 = vmatpush1.msra.mxu0 0.0
  %581 = vmatprep.subr.mxu0 0.0
  %582 = vmatpush1.msra.mxu0 0.0
  %583 = vmatprep.subr.mxu0 0.0
  %584 = vmatpush1.msra.mxu0 0.0
  %585 = vmatprep.subr.mxu0 0.0
  %586 = vmatpush1.msra.mxu0 0.0
  %587 = vmatprep.subr.mxu0 0.0
  %588 = vmatpush1.msra.mxu0 0.0
  %589 = vmatprep.subr.mxu0 0.0
  %590 = vmatpush1.msra.mxu0 0.0
  %591 = vmatprep.subr.mxu0 0.0
  %592 = vmatpush1.msra.mxu0 0.0
  %593 = vmatprep.subr.mxu0 0.0
  %594 = vmatpush1.msra.mxu0 0.0
  %595 = vmatprep.subr.mxu0 0.0
  %596 = vmatpush1.msra.mxu0 0.0
  %597 = vmatprep.subr.mxu0 0.0
  %598 = vmatpush1.msra.mxu0 0.0
  %599 = vmatprep.subr.mxu0 0.0
  %600 = vmatpush1.msra.mxu0 0.0
  %601 = vmatprep.subr.mxu0 0.0
  %602 = vmatpush1.msra.mxu0 0.0
  %603 = vmatprep.subr.mxu0 0.0
  %604 = vmatpush1.msra.mxu0 0.0
  %605 = vmatprep.subr.mxu0 0.0
  %606 = vmatpush1.msra.mxu0 0.0
  %607 = vmatprep.subr.mxu0 0.0
  %608 = vmatpush1.msra.mxu0 0.0
  %609 = vmatprep.subr.mxu0 0.0
  %610 = vmatpush1.msra.mxu0 0.0
  %611 = vmatprep.subr.mxu0 0.0
  %612 = vmatpush1.msra.mxu0 0.0
  %613 = vmatprep.subr.mxu0 0.0
  %614 = vmatpush1.msra.mxu0 0.0
  %615 = vmatprep.subr.mxu0 0.0
  %616 = vmatpush1.msra.mxu0 0.0
  %617 = vmatprep.subr.mxu0 0.0
  %618 = vmatpush1.msra.mxu0 0.0
  %619 = vmatprep.subr.mxu0 0.0
  %620 = vmatpush1.msra.mxu0 0.0
  %621 = vmatprep.subr.mxu0 0.0
  %622 = vmatpush1.msra.mxu0 0.0
  %623 = vmatprep.subr.mxu0 0.0
  %624 = vmatpush1.msra.mxu0 0.0
  %625 = vmatprep.subr.mxu0 0.0
  %626 = vmatpush1.msra.mxu0 0.0
  %627 = vmatprep.subr.mxu0 0.0
  %628 = vmatpush1.msra.mxu0 0.0
  %629 = vmatprep.subr.mxu0 0.0
  %630 = vmatpush1.msra.mxu0 0.0
  %631 = vmatprep.subr.mxu0 0.0
  %632 = vmatpush1.msra.mxu0 0.0
  %633 = vmatprep.mubr.f32.mxu0 0.0
  %634 = vmatmul.mubr.f32.gmra.mrb[0].mxu0 %v567
  %v635 = vpop.f32.mrb[0].mxu0
  %v636 = vadd.f32 %v565, %v635
  %v637 = vpop.f32.mrb[0].mxu0
  %638 = vdwg.mxu0
  %v639 = vmax.f32 %v636, 0.0
  %v640 = vlaneseq
  %v641 = vshrl.u32 %v640, 7
  %v642 = vsub.s32 0, %v641
  %v643 = vrot.slane %v37, %v642
  %v645 = vsel %vm47, %v639, 0
  %v648 = vsel %vm60, %v36, 0
  %650 = vmatprep.subr.mxu0 0.0
  %651 = vmatpush1.msra.mxu0 %v648
  %652 = vmatprep.subr.mxu0 0.0
  %653 = vmatpush1.msra.mxu0 0.0
  %654 = vmatprep.subr.mxu0 0.0
  %655 = vmatpush1.msra.mxu0 0.0
  %656 = vmatprep.subr.mxu0 0.0
  %657 = vmatpush1.msra.mxu0 0.0
  %658 = vmatprep.subr.mxu0 0.0
  %659 = vmatpush1.msra.mxu0 0.0
  %660 = vmatprep.subr.mxu0 0.0
  %661 = vmatpush1.msra.mxu0 0.0
  %662 = vmatprep.subr.mxu0 0.0
  %663 = vmatpush1.msra.mxu0 0.0
  %664 = vmatprep.subr.mxu0 0.0
  %665 = vmatpush1.msra.mxu0 0.0
  %666 = vmatprep.subr.mxu0 0.0
  %667 = vmatpush1.msra.mxu0 0.0
  %668 = vmatprep.subr.mxu0 0.0
  %669 = vmatpush1.msra.mxu0 0.0
  %670 = vmatprep.subr.mxu0 0.0
  %671 = vmatpush1.msra.mxu0 0.0
  %672 = vmatprep.subr.mxu0 0.0
  %673 = vmatpush1.msra.mxu0 0.0
  %674 = vmatprep.subr.mxu0 0.0
  %675 = vmatpush1.msra.mxu0 0.0
  %676 = vmatprep.subr.mxu0 0.0
  %677 = vmatpush1.msra.mxu0 0.0
  %678 = vmatprep.subr.mxu0 0.0
  %679 = vmatpush1.msra.mxu0 0.0
  %680 = vmatprep.subr.mxu0 0.0
  %681 = vmatpush1.msra.mxu0 0.0
  %682 = vmatprep.subr.mxu0 0.0
  %683 = vmatpush1.msra.mxu0 0.0
  %684 = vmatprep.subr.mxu0 0.0
  %685 = vmatpush1.msra.mxu0 0.0
  %686 = vmatprep.subr.mxu0 0.0
  %687 = vmatpush1.msra.mxu0 0.0
  %688 = vmatprep.subr.mxu0 0.0
  %689 = vmatpush1.msra.mxu0 0.0
  %690 = vmatprep.subr.mxu0 0.0
  %691 = vmatpush1.msra.mxu0 0.0
  %692 = vmatprep.subr.mxu0 0.0
  %693 = vmatpush1.msra.mxu0 0.0
  %694 = vmatprep.subr.mxu0 0.0
  %695 = vmatpush1.msra.mxu0 0.0
  %696 = vmatprep.subr.mxu0 0.0
  %697 = vmatpush1.msra.mxu0 0.0
  %698 = vmatprep.subr.mxu0 0.0
  %699 = vmatpush1.msra.mxu0 0.0
  %700 = vmatprep.subr.mxu0 0.0
  %701 = vmatpush1.msra.mxu0 0.0
  %702 = vmatprep.subr.mxu0 0.0
  %703 = vmatpush1.msra.mxu0 0.0
  %704 = vmatprep.subr.mxu0 0.0
  %705 = vmatpush1.msra.mxu0 0.0
  %706 = vmatprep.subr.mxu0 0.0
  %707 = vmatpush1.msra.mxu0 0.0
  %708 = vmatprep.subr.mxu0 0.0
  %709 = vmatpush1.msra.mxu0 0.0
  %710 = vmatprep.subr.mxu0 0.0
  %711 = vmatpush1.msra.mxu0 0.0
  %712 = vmatprep.subr.mxu0 0.0
  %713 = vmatpush1.msra.mxu0 0.0
  %714 = vmatprep.mubr.f32.mxu0 0.0
  %715 = vmatmul.mubr.f32.gmra.mrb[0].mxu0 %v645
  %v716 = vpop.f32.mrb[0].mxu0
  %v717 = vadd.f32 %v643, %v716
  %v718 = vpop.f32.mrb[0].mxu0
  %719 = vdwg.mxu0
  %v721 = vsel %vm47, %v636, 0
  %723 = vmatprep.subr.mxu0 0.0
  %724 = vmatpush1.msra.mxu0 %v62
  %725 = vmatprep.subr.mxu0 0.0
  %726 = vmatpush1.msra.mxu0 0.0
  %727 = vmatprep.subr.mxu0 0.0
  %728 = vmatpush1.msra.mxu0 0.0
  %729 = vmatprep.subr.mxu0 0.0
  %730 = vmatpush1.msra.mxu0 0.0
  %731 = vmatprep.subr.mxu0 0.0
  %732 = vmatpush1.msra.mxu0 0.0
  %733 = vmatprep.subr.mxu0 0.0
  %734 = vmatpush1.msra.mxu0 0.0
  %735 = vmatprep.subr.mxu0 0.0
  %736 = vmatpush1.msra.mxu0 0.0
  %737 = vmatprep.subr.mxu0 0.0
  %738 = vmatpush1.msra.mxu0 0.0
  %739 = vmatprep.subr.mxu0 0.0
  %740 = vmatpush1.msra.mxu0 0.0
  %741 = vmatprep.subr.mxu0 0.0
  %742 = vmatpush1.msra.mxu0 0.0
  %743 = vmatprep.subr.mxu0 0.0
  %744 = vmatpush1.msra.mxu0 0.0
  %745 = vmatprep.subr.mxu0 0.0
  %746 = vmatpush1.msra.mxu0 0.0
  %747 = vmatprep.subr.mxu0 0.0
  %748 = vmatpush1.msra.mxu0 0.0
  %749 = vmatprep.subr.mxu0 0.0
  %750 = vmatpush1.msra.mxu0 0.0
  %751 = vmatprep.subr.mxu0 0.0
  %752 = vmatpush1.msra.mxu0 0.0
  %753 = vmatprep.subr.mxu0 0.0
  %754 = vmatpush1.msra.mxu0 0.0
  %755 = vmatprep.subr.mxu0 0.0
  %756 = vmatpush1.msra.mxu0 0.0
  %757 = vmatprep.subr.mxu0 0.0
  %758 = vmatpush1.msra.mxu0 0.0
  %759 = vmatprep.subr.mxu0 0.0
  %760 = vmatpush1.msra.mxu0 0.0
  %761 = vmatprep.subr.mxu0 0.0
  %762 = vmatpush1.msra.mxu0 0.0
  %763 = vmatprep.subr.mxu0 0.0
  %764 = vmatpush1.msra.mxu0 0.0
  %765 = vmatprep.subr.mxu0 0.0
  %766 = vmatpush1.msra.mxu0 0.0
  %767 = vmatprep.subr.mxu0 0.0
  %768 = vmatpush1.msra.mxu0 0.0
  %769 = vmatprep.subr.mxu0 0.0
  %770 = vmatpush1.msra.mxu0 0.0
  %771 = vmatprep.subr.mxu0 0.0
  %772 = vmatpush1.msra.mxu0 0.0
  %773 = vmatprep.subr.mxu0 0.0
  %774 = vmatpush1.msra.mxu0 0.0
  %775 = vmatprep.subr.mxu0 0.0
  %776 = vmatpush1.msra.mxu0 0.0
  %777 = vmatprep.subr.mxu0 0.0
  %778 = vmatpush1.msra.mxu0 0.0
  %779 = vmatprep.subr.mxu0 0.0
  %780 = vmatpush1.msra.mxu0 0.0
  %781 = vmatprep.subr.mxu0 0.0
  %782 = vmatpush1.msra.mxu0 0.0
  %783 = vmatprep.subr.mxu0 0.0
  %784 = vmatpush1.msra.mxu0 0.0
  %785 = vmatprep.subr.mxu0 0.0
  %786 = vmatpush1.msra.mxu0 0.0
  %787 = vmatprep.mubr.f32.mxu0 0.0
  %788 = vmatmul.mubr.f32.gmra.mrb[0].mxu0 %v721
  %v789 = vpop.f32.mrb[0].mxu0
  %v790 = vadd.f32 %v46, %v789
  %v791 = vpop.f32.mrb[0].mxu0
  %792 = vdwg.mxu0
  %v794 = vrot.slane %v790, 2
  %v798 = vrot.slane %v219, 6
  %v799 = vrot.slane %v224, 6
  %v800 = vsel %vm391, %v798, %v799
  %v804 = vadd.f32 %v131, %v798
  %v805 = vadd.f32 %v136, %v800
  %v806 = vadd.f32 %v790, %v799
  %v807 = vxor.u32 %v804, 2147483648
  %v808 = vxor.u32 %v805, 2147483648
  %v809 = vxor.u32 %v806, 2147483648
  %v810 = vmul.f32 %v807, 1.442695
  %v811 = vpow.pop %v810
  %v812 = vmul.f32 %v808, 1.442695
  %v813 = vpow.pop %v812
  %v814 = vmul.f32 %v809, 1.442695
  %v815 = vpow.pop %v814
  %v816 = vadd.f32 %v811, 1.0
  %v817 = vadd.f32 %v813, 1.0
  %v818 = vadd.f32 %v815, 1.0
  %v819 = vrcp.pop %v816
  %v820 = vmul.f32 1.0, %v819
  %v821 = vrcp.pop %v817
  %v822 = vmul.f32 1.0, %v821
  %v823 = vrcp.pop %v818
  %v824 = vmul.f32 1.0, %v823
  %v825 = vtanh.pop %v804
  %v826 = vtanh.pop %v805
  %v827 = vtanh.pop %v806
  %v828 = vmul.f32 %v820, 0.0
  %v829 = vmul.f32 %v822, 0.0
  %v830 = vmul.f32 %v824, 0.0
  %834 = vrot.lane.b32.xlu0 %v825, 64
  %v835 = vpop.permute.xlu0 %834
  %836 = vrot.lane.b32.xlu0 %v826, 64
  %v837 = vpop.permute.xlu0 %836
  %838 = vrot.lane.b32.xlu0 %v827, 64
  %v839 = vpop.permute.xlu0 %838
  %v843 = vmul.f32 %v820, %v835
  %v844 = vmul.f32 %v822, %v837
  %v845 = vmul.f32 %v824, %v839
  %849 = vrot.lane.b32.xlu0 %v843, 32
  %v850 = vpop.permute.xlu0 %849
  %851 = vrot.lane.b32.xlu0 %v844, 32
  %v852 = vpop.permute.xlu0 %851
  %853 = vrot.lane.b32.xlu0 %v845, 32
  %v854 = vpop.permute.xlu0 %853
  %v858 = vadd.f32 %v828, %v850
  %v859 = vadd.f32 %v829, %v852
  %v860 = vadd.f32 %v830, %v854
  %v861 = vtanh.pop %v858
  %v862 = vtanh.pop %v859
  %v863 = vtanh.pop %v860
  %867 = vrot.lane.b32.xlu0 %v861, 64
  %v868 = vpop.permute.xlu0 %867
  %869 = vrot.lane.b32.xlu0 %v862, 64
  %v870 = vpop.permute.xlu0 %869
  %871 = vrot.lane.b32.xlu0 %v863, 64
  %v872 = vpop.permute.xlu0 %871
  %v876 = vmul.f32 %v820, %v868
  %v877 = vmul.f32 %v822, %v870
  %v878 = vmul.f32 %v824, %v872
  %v882 = vrot.slane %v876, 2
  %v883 = vrot.slane %v877, 2
  %v884 = vsel %vm60, %v882, %v883
  %v885 = vrot.slane %v878, 2
  %v886 = vsel %vm60, %v883, %v885
  %887 = vrot.lane.b32.xlu0 %v884, 32
  %v888 = vpop.permute.xlu0 %887
  %889 = vrot.lane.b32.xlu0 %v886, 32
  %v890 = vpop.permute.xlu0 %889
  %v891 = vsel %vm148, %v888, 0
  %v893 = vsel %vm148, %v890, 0
  %895 = vmatprep.subr.mxu0 0.0
  %896 = vmatpush1.msra.mxu0 %v15
  %897 = vmatprep.subr.mxu0 0.0
  %898 = vmatpush1.msra.mxu0 %v16
  %899 = vmatprep.subr.mxu0 0.0
  %900 = vmatpush1.msra.mxu0 %v17
  %901 = vmatprep.subr.mxu0 0.0
  %902 = vmatpush1.msra.mxu0 %v18
  %903 = vmatprep.subr.mxu0 0.0
  %904 = vmatpush1.msra.mxu0 0.0
  %905 = vmatprep.subr.mxu0 0.0
  %906 = vmatpush1.msra.mxu0 0.0
  %907 = vmatprep.subr.mxu0 0.0
  %908 = vmatpush1.msra.mxu0 0.0
  %909 = vmatprep.subr.mxu0 0.0
  %910 = vmatpush1.msra.mxu0 0.0
  %911 = vmatprep.subr.mxu0 0.0
  %912 = vmatpush1.msra.mxu0 0.0
  %913 = vmatprep.subr.mxu0 0.0
  %914 = vmatpush1.msra.mxu0 0.0
  %915 = vmatprep.subr.mxu0 0.0
  %916 = vmatpush1.msra.mxu0 0.0
  %917 = vmatprep.subr.mxu0 0.0
  %918 = vmatpush1.msra.mxu0 0.0
  %919 = vmatprep.subr.mxu0 0.0
  %920 = vmatpush1.msra.mxu0 0.0
  %921 = vmatprep.subr.mxu0 0.0
  %922 = vmatpush1.msra.mxu0 0.0
  %923 = vmatprep.subr.mxu0 0.0
  %924 = vmatpush1.msra.mxu0 0.0
  %925 = vmatprep.subr.mxu0 0.0
  %926 = vmatpush1.msra.mxu0 0.0
  %927 = vmatprep.subr.mxu0 0.0
  %928 = vmatpush1.msra.mxu0 0.0
  %929 = vmatprep.subr.mxu0 0.0
  %930 = vmatpush1.msra.mxu0 0.0
  %931 = vmatprep.subr.mxu0 0.0
  %932 = vmatpush1.msra.mxu0 0.0
  %933 = vmatprep.subr.mxu0 0.0
  %934 = vmatpush1.msra.mxu0 0.0
  %935 = vmatprep.subr.mxu0 0.0
  %936 = vmatpush1.msra.mxu0 0.0
  %937 = vmatprep.subr.mxu0 0.0
  %938 = vmatpush1.msra.mxu0 0.0
  %939 = vmatprep.subr.mxu0 0.0
  %940 = vmatpush1.msra.mxu0 0.0
  %941 = vmatprep.subr.mxu0 0.0
  %942 = vmatpush1.msra.mxu0 0.0
  %943 = vmatprep.subr.mxu0 0.0
  %944 = vmatpush1.msra.mxu0 0.0
  %945 = vmatprep.subr.mxu0 0.0
  %946 = vmatpush1.msra.mxu0 0.0
  %947 = vmatprep.subr.mxu0 0.0
  %948 = vmatpush1.msra.mxu0 0.0
  %949 = vmatprep.subr.mxu0 0.0
  %950 = vmatpush1.msra.mxu0 0.0
  %951 = vmatprep.subr.mxu0 0.0
  %952 = vmatpush1.msra.mxu0 0.0
  %953 = vmatprep.subr.mxu0 0.0
  %954 = vmatpush1.msra.mxu0 0.0
  %955 = vmatprep.subr.mxu0 0.0
  %956 = vmatpush1.msra.mxu0 0.0
  %957 = vmatprep.subr.mxu0 0.0
  %958 = vmatpush1.msra.mxu0 0.0
  %959 = vmatprep.mubr.f32.mxu0 0.0
  %960 = vmatmul.mubr.f32.gmra.mrb[0].mxu0 %v891
  %v961 = vpop.f32.mrb[0].mxu0
  %v962 = vpop.f32.mrb[0].mxu0
  %963 = vmatprep.mubr.f32.mxu0 0.0
  %964 = vmatmul.mubr.f32.gmra.mrb[0].mxu0 %v893
  %v965 = vpop.f32.mrb[0].mxu0
  %v966 = vadd.f32 0.0, %v965
  %v967 = vpop.f32.mrb[0].mxu0
  %968 = vdwg.mxu0
  %v970 = vrot.slane %v966, 6
  %v972 = vadd.f32 %v794, %v970
  %v973 = vxor.u32 %v972, 2147483648
  %v974 = vmul.f32 %v973, 1.442695
  %v975 = vpow.pop %v974
  %v976 = vadd.f32 %v975, 1.0
  %v977 = vrcp.pop %v976
  %v978 = vmul.f32 1.0, %v977
  %v979 = vtanh.pop %v972
  %v980 = vmul.f32 %v978, %v860
  %982 = vrot.lane.b32.xlu0 %v979, 64
  %v983 = vpop.permute.xlu0 %982
  %v985 = vmul.f32 %v978, %v983
  %987 = vrot.lane.b32.xlu0 %v985, 32
  %v988 = vpop.permute.xlu0 %987
  %v990 = vadd.f32 %v980, %v988
  %v991 = vtanh.pop %v990
  %993 = vrot.lane.b32.xlu0 %v991, 64
  %v994 = vpop.permute.xlu0 %993
  %v996 = vmul.f32 %v978, %v994
  %v998 = vrot.slane %v996, 6
  %v1000 = vsel %vm391, %v878, %v998
  %1001 = vset.pattern.permute.xlu0 1
  %1002 = vperm.xlu0 %1001, %v38
  %v1003 = vpop.permute.xlu0 %1002
  %v1005 = vmul.f32 %v1003, %v401
  %1007 = vrot.lane.b32.xlu0 %v1000, 32
  %v1008 = vpop.permute.xlu0 %1007
  %v1009 = vsel %vm148, %v1008, 0
  %1011 = vmatprep.subr.mxu0 0.0
  %1012 = vmatpush1.msra.mxu0 %v20
  %1013 = vmatprep.subr.mxu0 0.0
  %1014 = vmatpush1.msra.mxu0 %v21
  %1015 = vmatprep.subr.mxu0 0.0
  %1016 = vmatpush1.msra.mxu0 %v22
  %1017 = vmatprep.subr.mxu0 0.0
  %1018 = vmatpush1.msra.mxu0 %v23
  %1019 = vmatprep.subr.mxu0 0.0
  %1020 = vmatpush1.msra.mxu0 0.0
  %1021 = vmatprep.subr.mxu0 0.0
  %1022 = vmatpush1.msra.mxu0 0.0
  %1023 = vmatprep.subr.mxu0 0.0
  %1024 = vmatpush1.msra.mxu0 0.0
  %1025 = vmatprep.subr.mxu0 0.0
  %1026 = vmatpush1.msra.mxu0 0.0
  %1027 = vmatprep.subr.mxu0 0.0
  %1028 = vmatpush1.msra.mxu0 0.0
  %1029 = vmatprep.subr.mxu0 0.0
  %1030 = vmatpush1.msra.mxu0 0.0
  %1031 = vmatprep.subr.mxu0 0.0
  %1032 = vmatpush1.msra.mxu0 0.0
  %1033 = vmatprep.subr.mxu0 0.0
  %1034 = vmatpush1.msra.mxu0 0.0
  %1035 = vmatprep.subr.mxu0 0.0
  %1036 = vmatpush1.msra.mxu0 0.0
  %1037 = vmatprep.subr.mxu0 0.0
  %1038 = vmatpush1.msra.mxu0 0.0
  %1039 = vmatprep.subr.mxu0 0.0
  %1040 = vmatpush1.msra.mxu0 0.0
  %1041 = vmatprep.subr.mxu0 0.0
  %1042 = vmatpush1.msra.mxu0 0.0
  %1043 = vmatprep.subr.mxu0 0.0
  %1044 = vmatpush1.msra.mxu0 0.0
  %1045 = vmatprep.subr.mxu0 0.0
  %1046 = vmatpush1.msra.mxu0 0.0
  %1047 = vmatprep.subr.mxu0 0.0
  %1048 = vmatpush1.msra.mxu0 0.0
  %1049 = vmatprep.subr.mxu0 0.0
  %1050 = vmatpush1.msra.mxu0 0.0
  %1051 = vmatprep.subr.mxu0 0.0
  %1052 = vmatpush1.msra.mxu0 0.0
  %1053 = vmatprep.subr.mxu0 0.0
  %1054 = vmatpush1.msra.mxu0 0.0
  %1055 = vmatprep.subr.mxu0 0.0
  %1056 = vmatpush1.msra.mxu0 0.0
  %1057 = vmatprep.subr.mxu0 0.0
  %1058 = vmatpush1.msra.mxu0 0.0
  %1059 = vmatprep.subr.mxu0 0.0
  %1060 = vmatpush1.msra.mxu0 0.0
  %1061 = vmatprep.subr.mxu0 0.0
  %1062 = vmatpush1.msra.mxu0 0.0
  %1063 = vmatprep.subr.mxu0 0.0
  %1064 = vmatpush1.msra.mxu0 0.0
  %1065 = vmatprep.subr.mxu0 0.0
  %1066 = vmatpush1.msra.mxu0 0.0
  %1067 = vmatprep.subr.mxu0 0.0
  %1068 = vmatpush1.msra.mxu0 0.0
  %1069 = vmatprep.subr.mxu0 0.0
  %1070 = vmatpush1.msra.mxu0 0.0
  %1071 = vmatprep.subr.mxu0 0.0
  %1072 = vmatpush1.msra.mxu0 0.0
  %1073 = vmatprep.subr.mxu0 0.0
  %1074 = vmatpush1.msra.mxu0 0.0
  %1075 = vmatprep.mubr.f32.mxu0 0.0
  %1076 = vmatmul.mubr.f32.gmra.mrb[0].mxu0 %v1009
  %v1077 = vpop.f32.mrb[0].mxu0
  %v1078 = vadd.f32 %v1005, %v1077
  %v1079 = vpop.f32.mrb[0].mxu0
  %1080 = vdwg.mxu0
  %v1081 = vadd.f32 %v1078, %v481
  %v1082 = vmax.f32 %v1081, 0.0
  %v1084 = vsel %vm148, %v1082, 0
  %1086 = vmatprep.subr.mxu0 0.0
  %1087 = vmatpush1.msra.mxu0 %v26
  %1088 = vmatprep.subr.mxu0 0.0
  %1089 = vmatpush1.msra.mxu0 %v27
  %1090 = vmatprep.subr.mxu0 0.0
  %1091 = vmatpush1.msra.mxu0 %v28
  %1092 = vmatprep.subr.mxu0 0.0
  %1093 = vmatpush1.msra.mxu0 %v29
  %1094 = vmatprep.subr.mxu0 0.0
  %1095 = vmatpush1.msra.mxu0 0.0
  %1096 = vmatprep.subr.mxu0 0.0
  %1097 = vmatpush1.msra.mxu0 0.0
  %1098 = vmatprep.subr.mxu0 0.0
  %1099 = vmatpush1.msra.mxu0 0.0
  %1100 = vmatprep.subr.mxu0 0.0
  %1101 = vmatpush1.msra.mxu0 0.0
  %1102 = vmatprep.subr.mxu0 0.0
  %1103 = vmatpush1.msra.mxu0 0.0
  %1104 = vmatprep.subr.mxu0 0.0
  %1105 = vmatpush1.msra.mxu0 0.0
  %1106 = vmatprep.subr.mxu0 0.0
  %1107 = vmatpush1.msra.mxu0 0.0
  %1108 = vmatprep.subr.mxu0 0.0
  %1109 = vmatpush1.msra.mxu0 0.0
  %1110 = vmatprep.subr.mxu0 0.0
  %1111 = vmatpush1.msra.mxu0 0.0
  %1112 = vmatprep.subr.mxu0 0.0
  %1113 = vmatpush1.msra.mxu0 0.0
  %1114 = vmatprep.subr.mxu0 0.0
  %1115 = vmatpush1.msra.mxu0 0.0
  %1116 = vmatprep.subr.mxu0 0.0
  %1117 = vmatpush1.msra.mxu0 0.0
  %1118 = vmatprep.subr.mxu0 0.0
  %1119 = vmatpush1.msra.mxu0 0.0
  %1120 = vmatprep.subr.mxu0 0.0
  %1121 = vmatpush1.msra.mxu0 0.0
  %1122 = vmatprep.subr.mxu0 0.0
  %1123 = vmatpush1.msra.mxu0 0.0
  %1124 = vmatprep.subr.mxu0 0.0
  %1125 = vmatpush1.msra.mxu0 0.0
  %1126 = vmatprep.subr.mxu0 0.0
  %1127 = vmatpush1.msra.mxu0 0.0
  %1128 = vmatprep.subr.mxu0 0.0
  %1129 = vmatpush1.msra.mxu0 0.0
  %1130 = vmatprep.subr.mxu0 0.0
  %1131 = vmatpush1.msra.mxu0 0.0
  %1132 = vmatprep.subr.mxu0 0.0
  %1133 = vmatpush1.msra.mxu0 0.0
  %1134 = vmatprep.subr.mxu0 0.0
  %1135 = vmatpush1.msra.mxu0 0.0
  %1136 = vmatprep.subr.mxu0 0.0
  %1137 = vmatpush1.msra.mxu0 0.0
  %1138 = vmatprep.subr.mxu0 0.0
  %1139 = vmatpush1.msra.mxu0 0.0
  %1140 = vmatprep.subr.mxu0 0.0
  %1141 = vmatpush1.msra.mxu0 0.0
  %1142 = vmatprep.subr.mxu0 0.0
  %1143 = vmatpush1.msra.mxu0 0.0
  %1144 = vmatprep.subr.mxu0 0.0
  %1145 = vmatpush1.msra.mxu0 0.0
  %1146 = vmatprep.subr.mxu0 0.0
  %1147 = vmatpush1.msra.mxu0 0.0
  %1148 = vmatprep.subr.mxu0 0.0
  %1149 = vmatpush1.msra.mxu0 0.0
  %1150 = vmatprep.mubr.f32.mxu0 0.0
  %1151 = vmatmul.mubr.f32.gmra.mrb[0].mxu0 %v1084
  %v1152 = vpop.f32.mrb[0].mxu0
  %v1153 = vadd.f32 %v487, %v1152
  %v1154 = vpop.f32.mrb[0].mxu0
  %1155 = vdwg.mxu0
  %v1156 = vmax.f32 %v1153, 0.0
  %v1158 = vsel %vm148, %v1156, 0
  %1160 = vmatprep.subr.mxu0 0.0
  %1161 = vmatpush1.msra.mxu0 %v31
  %1162 = vmatprep.subr.mxu0 0.0
  %1163 = vmatpush1.msra.mxu0 %v32
  %1164 = vmatprep.subr.mxu0 0.0
  %1165 = vmatpush1.msra.mxu0 %v33
  %1166 = vmatprep.subr.mxu0 0.0
  %1167 = vmatpush1.msra.mxu0 %v34
  %1168 = vmatprep.subr.mxu0 0.0
  %1169 = vmatpush1.msra.mxu0 0.0
  %1170 = vmatprep.subr.mxu0 0.0
  %1171 = vmatpush1.msra.mxu0 0.0
  %1172 = vmatprep.subr.mxu0 0.0
  %1173 = vmatpush1.msra.mxu0 0.0
  %1174 = vmatprep.subr.mxu0 0.0
  %1175 = vmatpush1.msra.mxu0 0.0
  %1176 = vmatprep.subr.mxu0 0.0
  %1177 = vmatpush1.msra.mxu0 0.0
  %1178 = vmatprep.subr.mxu0 0.0
  %1179 = vmatpush1.msra.mxu0 0.0
  %1180 = vmatprep.subr.mxu0 0.0
  %1181 = vmatpush1.msra.mxu0 0.0
  %1182 = vmatprep.subr.mxu0 0.0
  %1183 = vmatpush1.msra.mxu0 0.0
  %1184 = vmatprep.subr.mxu0 0.0
  %1185 = vmatpush1.msra.mxu0 0.0
  %1186 = vmatprep.subr.mxu0 0.0
  %1187 = vmatpush1.msra.mxu0 0.0
  %1188 = vmatprep.subr.mxu0 0.0
  %1189 = vmatpush1.msra.mxu0 0.0
  %1190 = vmatprep.subr.mxu0 0.0
  %1191 = vmatpush1.msra.mxu0 0.0
  %1192 = vmatprep.subr.mxu0 0.0
  %1193 = vmatpush1.msra.mxu0 0.0
  %1194 = vmatprep.subr.mxu0 0.0
  %1195 = vmatpush1.msra.mxu0 0.0
  %1196 = vmatprep.subr.mxu0 0.0
  %1197 = vmatpush1.msra.mxu0 0.0
  %1198 = vmatprep.subr.mxu0 0.0
  %1199 = vmatpush1.msra.mxu0 0.0
  %1200 = vmatprep.subr.mxu0 0.0
  %1201 = vmatpush1.msra.mxu0 0.0
  %1202 = vmatprep.subr.mxu0 0.0
  %1203 = vmatpush1.msra.mxu0 0.0
  %1204 = vmatprep.subr.mxu0 0.0
  %1205 = vmatpush1.msra.mxu0 0.0
  %1206 = vmatprep.subr.mxu0 0.0
  %1207 = vmatpush1.msra.mxu0 0.0
  %1208 = vmatprep.subr.mxu0 0.0
  %1209 = vmatpush1.msra.mxu0 0.0
  %1210 = vmatprep.subr.mxu0 0.0
  %1211 = vmatpush1.msra.mxu0 0.0
  %1212 = vmatprep.subr.mxu0 0.0
  %1213 = vmatpush1.msra.mxu0 0.0
  %1214 = vmatprep.subr.mxu0 0.0
  %1215 = vmatpush1.msra.mxu0 0.0
  %1216 = vmatprep.subr.mxu0 0.0
  %1217 = vmatpush1.msra.mxu0 0.0
  %1218 = vmatprep.subr.mxu0 0.0
  %1219 = vmatpush1.msra.mxu0 0.0
  %1220 = vmatprep.subr.mxu0 0.0
  %1221 = vmatpush1.msra.mxu0 0.0
  %1222 = vmatprep.subr.mxu0 0.0
  %1223 = vmatpush1.msra.mxu0 0.0
  %1224 = vmatprep.mubr.f32.mxu0 0.0
  %1225 = vmatmul.mubr.f32.gmra.mrb[0].mxu0 %v1158
  %v1226 = vpop.f32.mrb[0].mxu0
  %v1227 = vadd.f32 %v565, %v1226
  %v1228 = vpop.f32.mrb[0].mxu0
  %1229 = vdwg.mxu0
  %v1230 = vmax.f32 %v1227, 0.0
  %v1232 = vsel %vm47, %v1230, 0
  %1234 = vmatprep.subr.mxu0 0.0
  %1235 = vmatpush1.msra.mxu0 %v648
  %1236 = vmatprep.subr.mxu0 0.0
  %1237 = vmatpush1.msra.mxu0 0.0
  %1238 = vmatprep.subr.mxu0 0.0
  %1239 = vmatpush1.msra.mxu0 0.0
  %1240 = vmatprep.subr.mxu0 0.0
  %1241 = vmatpush1.msra.mxu0 0.0
  %1242 = vmatprep.subr.mxu0 0.0
  %1243 = vmatpush1.msra.mxu0 0.0
  %1244 = vmatprep.subr.mxu0 0.0
  %1245 = vmatpush1.msra.mxu0 0.0
  %1246 = vmatprep.subr.mxu0 0.0
  %1247 = vmatpush1.msra.mxu0 0.0
  %1248 = vmatprep.subr.mxu0 0.0
  %1249 = vmatpush1.msra.mxu0 0.0
  %1250 = vmatprep.subr.mxu0 0.0
  %1251 = vmatpush1.msra.mxu0 0.0
  %1252 = vmatprep.subr.mxu0 0.0
  %1253 = vmatpush1.msra.mxu0 0.0
  %1254 = vmatprep.subr.mxu0 0.0
  %1255 = vmatpush1.msra.mxu0 0.0
  %1256 = vmatprep.subr.mxu0 0.0
  %1257 = vmatpush1.msra.mxu0 0.0
  %1258 = vmatprep.subr.mxu0 0.0
  %1259 = vmatpush1.msra.mxu0 0.0
  %1260 = vmatprep.subr.mxu0 0.0
  %1261 = vmatpush1.msra.mxu0 0.0
  %1262 = vmatprep.subr.mxu0 0.0
  %1263 = vmatpush1.msra.mxu0 0.0
  %1264 = vmatprep.subr.mxu0 0.0
  %1265 = vmatpush1.msra.mxu0 0.0
  %1266 = vmatprep.subr.mxu0 0.0
  %1267 = vmatpush1.msra.mxu0 0.0
  %1268 = vmatprep.subr.mxu0 0.0
  %1269 = vmatpush1.msra.mxu0 0.0
  %1270 = vmatprep.subr.mxu0 0.0
  %1271 = vmatpush1.msra.mxu0 0.0
  %1272 = vmatprep.subr.mxu0 0.0
  %1273 = vmatpush1.msra.mxu0 0.0
  %1274 = vmatprep.subr.mxu0 0.0
  %1275 = vmatpush1.msra.mxu0 0.0
  %1276 = vmatprep.subr.mxu0 0.0
  %1277 = vmatpush1.msra.mxu0 0.0
  %1278 = vmatprep.subr.mxu0 0.0
  %1279 = vmatpush1.msra.mxu0 0.0
  %1280 = vmatprep.subr.mxu0 0.0
  %1281 = vmatpush1.msra.mxu0 0.0
  %1282 = vmatprep.subr.mxu0 0.0
  %1283 = vmatpush1.msra.mxu0 0.0
  %1284 = vmatprep.subr.mxu0 0.0
  %1285 = vmatpush1.msra.mxu0 0.0
  %1286 = vmatprep.subr.mxu0 0.0
  %1287 = vmatpush1.msra.mxu0 0.0
  %1288 = vmatprep.subr.mxu0 0.0
  %1289 = vmatpush1.msra.mxu0 0.0
  %1290 = vmatprep.subr.mxu0 0.0
  %1291 = vmatpush1.msra.mxu0 0.0
  %1292 = vmatprep.subr.mxu0 0.0
  %1293 = vmatpush1.msra.mxu0 0.0
  %1294 = vmatprep.subr.mxu0 0.0
  %1295 = vmatpush1.msra.mxu0 0.0
  %1296 = vmatprep.subr.mxu0 0.0
  %1297 = vmatpush1.msra.mxu0 0.0
  %1298 = vmatprep.mubr.f32.mxu0 0.0
  %1299 = vmatmul.mubr.f32.gmra.mrb[0].mxu0 %v1232
  %v1300 = vpop.f32.mrb[0].mxu0
  %v1301 = vadd.f32 %v643, %v1300
  %v1302 = vpop.f32.mrb[0].mxu0
  %1303 = vdwg.mxu0
  %v1305 = vsel %vm47, %v1227, 0
  %1307 = vmatprep.subr.mxu0 0.0
  %1308 = vmatpush1.msra.mxu0 %v62
  %1309 = vmatprep.subr.mxu0 0.0
  %1310 = vmatpush1.msra.mxu0 0.0
  %1311 = vmatprep.subr.mxu0 0.0
  %1312 = vmatpush1.msra.mxu0 0.0
  %1313 = vmatprep.subr.mxu0 0.0
  %1314 = vmatpush1.msra.mxu0 0.0
  %1315 = vmatprep.subr.mxu0 0.0
  %1316 = vmatpush1.msra.mxu0 0.0
  %1317 = vmatprep.subr.mxu0 0.0
  %1318 = vmatpush1.msra.mxu0 0.0
  %1319 = vmatprep.subr.mxu0 0.0
  %1320 = vmatpush1.msra.mxu0 0.0
  %1321 = vmatprep.subr.mxu0 0.0
  %1322 = vmatpush1.msra.mxu0 0.0
  %1323 = vmatprep.subr.mxu0 0.0
  %1324 = vmatpush1.msra.mxu0 0.0
  %1325 = vmatprep.subr.mxu0 0.0
  %1326 = vmatpush1.msra.mxu0 0.0
  %1327 = vmatprep.subr.mxu0 0.0
  %1328 = vmatpush1.msra.mxu0 0.0
  %1329 = vmatprep.subr.mxu0 0.0
  %1330 = vmatpush1.msra.mxu0 0.0
  %1331 = vmatprep.subr.mxu0 0.0
  %1332 = vmatpush1.msra.mxu0 0.0
  %1333 = vmatprep.subr.mxu0 0.0
  %1334 = vmatpush1.msra.mxu0 0.0
  %1335 = vmatprep.subr.mxu0 0.0
  %1336 = vmatpush1.msra.mxu0 0.0
  %1337 = vmatprep.subr.mxu0 0.0
  %1338 = vmatpush1.msra.mxu0 0.0
  %1339 = vmatprep.subr.mxu0 0.0
  %1340 = vmatpush1.msra.mxu0 0.0
  %1341 = vmatprep.subr.mxu0 0.0
  %1342 = vmatpush1.msra.mxu0 0.0
  %1343 = vmatprep.subr.mxu0 0.0
  %1344 = vmatpush1.msra.mxu0 0.0
  %1345 = vmatprep.subr.mxu0 0.0
  %1346 = vmatpush1.msra.mxu0 0.0
  %1347 = vmatprep.subr.mxu0 0.0
  %1348 = vmatpush1.msra.mxu0 0.0
  %1349 = vmatprep.subr.mxu0 0.0
  %1350 = vmatpush1.msra.mxu0 0.0
  %1351 = vmatprep.subr.mxu0 0.0
  %1352 = vmatpush1.msra.mxu0 0.0
  %1353 = vmatprep.subr.mxu0 0.0
  %1354 = vmatpush1.msra.mxu0 0.0
  %1355 = vmatprep.subr.mxu0 0.0
  %1356 = vmatpush1.msra.mxu0 0.0
  %1357 = vmatprep.subr.mxu0 0.0
  %1358 = vmatpush1.msra.mxu0 0.0
  %1359 = vmatprep.subr.mxu0 0.0
  %1360 = vmatpush1.msra.mxu0 0.0
  %1361 = vmatprep.subr.mxu0 0.0
  %1362 = vmatpush1.msra.mxu0 0.0
  %1363 = vmatprep.subr.mxu0 0.0
  %1364 = vmatpush1.msra.mxu0 0.0
  %1365 = vmatprep.subr.mxu0 0.0
  %1366 = vmatpush1.msra.mxu0 0.0
  %1367 = vmatprep.subr.mxu0 0.0
  %1368 = vmatpush1.msra.mxu0 0.0
  %1369 = vmatprep.subr.mxu0 0.0
  %1370 = vmatpush1.msra.mxu0 0.0
  %1371 = vmatprep.mubr.f32.mxu0 0.0
  %1372 = vmatmul.mubr.f32.gmra.mrb[0].mxu0 %v1305
  %v1373 = vpop.f32.mrb[0].mxu0
  %v1374 = vadd.f32 %v46, %v1373
  %v1375 = vpop.f32.mrb[0].mxu0
  %1376 = vdwg.mxu0
  %v1378 = vrot.slane %v1374, 6
  %v1380 = vsel %vm391, %v790, %v1378
  %v1381 = vsel %vm391, %v794, %v1374
  %vm1382 = vcmask 1043456
  %v1383 = vrot.slane %v219, 4
  %v1384 = vrot.slane %v224, 4
  %v1385 = vsel %vm1382, %v1383, %v1384
  %v1389 = vadd.f32 %v131, %v1383
  %v1390 = vadd.f32 %v136, %v1385
  %v1391 = vadd.f32 %v1380, %v1384
  %v1392 = vxor.u32 %v1389, 2147483648
  %v1393 = vxor.u32 %v1390, 2147483648
  %v1394 = vxor.u32 %v1391, 2147483648
  %v1395 = vmul.f32 %v1392, 1.442695
  %v1396 = vpow.pop %v1395
  %v1397 = vmul.f32 %v1393, 1.442695
  %v1398 = vpow.pop %v1397
  %v1399 = vmul.f32 %v1394, 1.442695
  %v1400 = vpow.pop %v1399
  %v1401 = vadd.f32 %v1396, 1.0
  %v1402 = vadd.f32 %v1398, 1.0
  %v1403 = vadd.f32 %v1400, 1.0
  %v1404 = vrcp.pop %v1401
  %v1405 = vmul.f32 1.0, %v1404
  %v1406 = vrcp.pop %v1402
  %v1407 = vmul.f32 1.0, %v1406
  %v1408 = vrcp.pop %v1403
  %v1409 = vmul.f32 1.0, %v1408
  %v1410 = vtanh.pop %v1389
  %v1411 = vtanh.pop %v1390
  %v1412 = vtanh.pop %v1391
  %v1413 = vmul.f32 %v1405, 0.0
  %v1414 = vmul.f32 %v1407, 0.0
  %v1415 = vmul.f32 %v1409, 0.0
  %1419 = vrot.lane.b32.xlu0 %v1410, 64
  %v1420 = vpop.permute.xlu0 %1419
  %1421 = vrot.lane.b32.xlu0 %v1411, 64
  %v1422 = vpop.permute.xlu0 %1421
  %1423 = vrot.lane.b32.xlu0 %v1412, 64
  %v1424 = vpop.permute.xlu0 %1423
  %v1428 = vmul.f32 %v1405, %v1420
  %v1429 = vmul.f32 %v1407, %v1422
  %v1430 = vmul.f32 %v1409, %v1424
  %1434 = vrot.lane.b32.xlu0 %v1428, 32
  %v1435 = vpop.permute.xlu0 %1434
  %1436 = vrot.lane.b32.xlu0 %v1429, 32
  %v1437 = vpop.permute.xlu0 %1436
  %1438 = vrot.lane.b32.xlu0 %v1430, 32
  %v1439 = vpop.permute.xlu0 %1438
  %v1443 = vadd.f32 %v1413, %v1435
  %v1444 = vadd.f32 %v1414, %v1437
  %v1445 = vadd.f32 %v1415, %v1439
  %v1446 = vtanh.pop %v1443
  %v1447 = vtanh.pop %v1444
  %v1448 = vtanh.pop %v1445
  %1452 = vrot.lane.b32.xlu0 %v1446, 64
  %v1453 = vpop.permute.xlu0 %1452
  %1454 = vrot.lane.b32.xlu0 %v1447, 64
  %v1455 = vpop.permute.xlu0 %1454
  %1456 = vrot.lane.b32.xlu0 %v1448, 64
  %v1457 = vpop.permute.xlu0 %1456
  %v1461 = vmul.f32 %v1405, %v1453
  %v1462 = vmul.f32 %v1407, %v1455
  %v1463 = vmul.f32 %v1409, %v1457
  %v1467 = vrot.slane %v1461, 4
  %v1468 = vrot.slane %v1462, 4
  %v1469 = vsel %vm1382, %v1467, %v1468
  %v1470 = vrot.slane %v1463, 4
  %v1471 = vsel %vm1382, %v1468, %v1470
  %1472 = vrot.lane.b32.xlu0 %v1469, 32
  %v1473 = vpop.permute.xlu0 %1472
  %1474 = vrot.lane.b32.xlu0 %v1471, 32
  %v1475 = vpop.permute.xlu0 %1474
  %v1476 = vsel %vm148, %v1473, 0
  %v1478 = vsel %vm148, %v1475, 0
  %1480 = vmatprep.subr.mxu0 0.0
  %1481 = vmatpush1.msra.mxu0 %v15
  %1482 = vmatprep.subr.mxu0 0.0
  %1483 = vmatpush1.msra.mxu0 %v16
  %1484 = vmatprep.subr.mxu0 0.0
  %1485 = vmatpush1.msra.mxu0 %v17
  %1486 = vmatprep.subr.mxu0 0.0
  %1487 = vmatpush1.msra.mxu0 %v18
  %1488 = vmatprep.subr.mxu0 0.0
  %1489 = vmatpush1.msra.mxu0 0.0
  %1490 = vmatprep.subr.mxu0 0.0
  %1491 = vmatpush1.msra.mxu0 0.0
  %1492 = vmatprep.subr.mxu0 0.0
  %1493 = vmatpush1.msra.mxu0 0.0
  %1494 = vmatprep.subr.mxu0 0.0
  %1495 = vmatpush1.msra.mxu0 0.0
  %1496 = vmatprep.subr.mxu0 0.0
  %1497 = vmatpush1.msra.mxu0 0.0
  %1498 = vmatprep.subr.mxu0 0.0
  %1499 = vmatpush1.msra.mxu0 0.0
  %1500 = vmatprep.subr.mxu0 0.0
  %1501 = vmatpush1.msra.mxu0 0.0
  %1502 = vmatprep.subr.mxu0 0.0
  %1503 = vmatpush1.msra.mxu0 0.0
  %1504 = vmatprep.subr.mxu0 0.0
  %1505 = vmatpush1.msra.mxu0 0.0
  %1506 = vmatprep.subr.mxu0 0.0
  %1507 = vmatpush1.msra.mxu0 0.0
  %1508 = vmatprep.subr.mxu0 0.0
  %1509 = vmatpush1.msra.mxu0 0.0
  %1510 = vmatprep.subr.mxu0 0.0
  %1511 = vmatpush1.msra.mxu0 0.0
  %1512 = vmatprep.subr.mxu0 0.0
  %1513 = vmatpush1.msra.mxu0 0.0
  %1514 = vmatprep.subr.mxu0 0.0
  %1515 = vmatpush1.msra.mxu0 0.0
  %1516 = vmatprep.subr.mxu0 0.0
  %1517 = vmatpush1.msra.mxu0 0.0
  %1518 = vmatprep.subr.mxu0 0.0
  %1519 = vmatpush1.msra.mxu0 0.0
  %1520 = vmatprep.subr.mxu0 0.0
  %1521 = vmatpush1.msra.mxu0 0.0
  %1522 = vmatprep.subr.mxu0 0.0
  %1523 = vmatpush1.msra.mxu0 0.0
  %1524 = vmatprep.subr.mxu0 0.0
  %1525 = vmatpush1.msra.mxu0 0.0
  %1526 = vmatprep.subr.mxu0 0.0
  %1527 = vmatpush1.msra.mxu0 0.0
  %1528 = vmatprep.subr.mxu0 0.0
  %1529 = vmatpush1.msra.mxu0 0.0
  %1530 = vmatprep.subr.mxu0 0.0
  %1531 = vmatpush1.msra.mxu0 0.0
  %1532 = vmatprep.subr.mxu0 0.0
  %1533 = vmatpush1.msra.mxu0 0.0
  %1534 = vmatprep.subr.mxu0 0.0
  %1535 = vmatpush1.msra.mxu0 0.0
  %1536 = vmatprep.subr.mxu0 0.0
  %1537 = vmatpush1.msra.mxu0 0.0
  %1538 = vmatprep.subr.mxu0 0.0
  %1539 = vmatpush1.msra.mxu0 0.0
  %1540 = vmatprep.subr.mxu0 0.0
  %1541 = vmatpush1.msra.mxu0 0.0
  %1542 = vmatprep.subr.mxu0 0.0
  %1543 = vmatpush1.msra.mxu0 0.0
  %1544 = vmatprep.mubr.f32.mxu0 0.0
  %1545 = vmatmul.mubr.f32.gmra.mrb[0].mxu0 %v1476
  %v1546 = vpop.f32.mrb[0].mxu0
  %v1547 = vpop.f32.mrb[0].mxu0
  %1548 = vmatprep.mubr.f32.mxu0 0.0
  %1549 = vmatmul.mubr.f32.gmra.mrb[0].mxu0 %v1478
  %v1550 = vpop.f32.mrb[0].mxu0
  %v1551 = vadd.f32 0.0, %v1550
  %v1552 = vpop.f32.mrb[0].mxu0
  %1553 = vdwg.mxu0
  %v1555 = vrot.slane %v1551, 4
  %v1557 = vadd.f32 %v1381, %v1555
  %v1558 = vxor.u32 %v1557, 2147483648
  %v1559 = vmul.f32 %v1558, 1.442695
  %v1560 = vpow.pop %v1559
  %v1561 = vadd.f32 %v1560, 1.0
  %v1562 = vrcp.pop %v1561
  %v1563 = vmul.f32 1.0, %v1562
  %v1564 = vtanh.pop %v1557
  %v1565 = vmul.f32 %v1563, %v1445
  %1567 = vrot.lane.b32.xlu0 %v1564, 64
  %v1568 = vpop.permute.xlu0 %1567
  %v1570 = vmul.f32 %v1563, %v1568
  %1572 = vrot.lane.b32.xlu0 %v1570, 32
  %v1573 = vpop.permute.xlu0 %1572
  %v1575 = vadd.f32 %v1565, %v1573
  %v1576 = vtanh.pop %v1575
  %1578 = vrot.lane.b32.xlu0 %v1576, 64
  %v1579 = vpop.permute.xlu0 %1578
  %v1581 = vmul.f32 %v1563, %v1579
  %v1582 = vrot.slane %v1463, 2
  %v1584 = vsel %vm391, %v1582, %v1581
  %1585 = vset.pattern.permute.xlu0 2
  %1586 = vperm.xlu0 %1585, %v38
  %v1587 = vpop.permute.xlu0 %1586
  %v1589 = vmul.f32 %v1587, %v401
  %1591 = vrot.lane.b32.xlu0 %v1584, 32
  %v1592 = vpop.permute.xlu0 %1591
  %v1593 = vsel %vm148, %v1592, 0
  %1595 = vmatprep.subr.mxu0 0.0
  %1596 = vmatpush1.msra.mxu0 %v20
  %1597 = vmatprep.subr.mxu0 0.0
  %1598 = vmatpush1.msra.mxu0 %v21
  %1599 = vmatprep.subr.mxu0 0.0
  %1600 = vmatpush1.msra.mxu0 %v22
  %1601 = vmatprep.subr.mxu0 0.0
  %1602 = vmatpush1.msra.mxu0 %v23
  %1603 = vmatprep.subr.mxu0 0.0
  %1604 = vmatpush1.msra.mxu0 0.0
  %1605 = vmatprep.subr.mxu0 0.0
  %1606 = vmatpush1.msra.mxu0 0.0
  %1607 = vmatprep.subr.mxu0 0.0
  %1608 = vmatpush1.msra.mxu0 0.0
  %1609 = vmatprep.subr.mxu0 0.0
  %1610 = vmatpush1.msra.mxu0 0.0
  %1611 = vmatprep.subr.mxu0 0.0
  %1612 = vmatpush1.msra.mxu0 0.0
  %1613 = vmatprep.subr.mxu0 0.0
  %1614 = vmatpush1.msra.mxu0 0.0
  %1615 = vmatprep.subr.mxu0 0.0
  %1616 = vmatpush1.msra.mxu0 0.0
  %1617 = vmatprep.subr.mxu0 0.0
  %1618 = vmatpush1.msra.mxu0 0.0
  %1619 = vmatprep.subr.mxu0 0.0
  %1620 = vmatpush1.msra.mxu0 0.0
  %1621 = vmatprep.subr.mxu0 0.0
  %1622 = vmatpush1.msra.mxu0 0.0
  %1623 = vmatprep.subr.mxu0 0.0
  %1624 = vmatpush1.msra.mxu0 0.0
  %1625 = vmatprep.subr.mxu0 0.0
  %1626 = vmatpush1.msra.mxu0 0.0
  %1627 = vmatprep.subr.mxu0 0.0
  %1628 = vmatpush1.msra.mxu0 0.0
  %1629 = vmatprep.subr.mxu0 0.0
  %1630 = vmatpush1.msra.mxu0 0.0
  %1631 = vmatprep.subr.mxu0 0.0
  %1632 = vmatpush1.msra.mxu0 0.0
  %1633 = vmatprep.subr.mxu0 0.0
  %1634 = vmatpush1.msra.mxu0 0.0
  %1635 = vmatprep.subr.mxu0 0.0
  %1636 = vmatpush1.msra.mxu0 0.0
  %1637 = vmatprep.subr.mxu0 0.0
  %1638 = vmatpush1.msra.mxu0 0.0
  %1639 = vmatprep.subr.mxu0 0.0
  %1640 = vmatpush1.msra.mxu0 0.0
  %1641 = vmatprep.subr.mxu0 0.0
  %1642 = vmatpush1.msra.mxu0 0.0
  %1643 = vmatprep.subr.mxu0 0.0
  %1644 = vmatpush1.msra.mxu0 0.0
  %1645 = vmatprep.subr.mxu0 0.0
  %1646 = vmatpush1.msra.mxu0 0.0
  %1647 = vmatprep.subr.mxu0 0.0
  %1648 = vmatpush1.msra.mxu0 0.0
  %1649 = vmatprep.subr.mxu0 0.0
  %1650 = vmatpush1.msra.mxu0 0.0
  %1651 = vmatprep.subr.mxu0 0.0
  %1652 = vmatpush1.msra.mxu0 0.0
  %1653 = vmatprep.subr.mxu0 0.0
  %1654 = vmatpush1.msra.mxu0 0.0
  %1655 = vmatprep.subr.mxu0 0.0
  %1656 = vmatpush1.msra.mxu0 0.0
  %1657 = vmatprep.subr.mxu0 0.0
  %1658 = vmatpush1.msra.mxu0 0.0
  %1659 = vmatprep.mubr.f32.mxu0 0.0
  %1660 = vmatmul.mubr.f32.gmra.mrb[0].mxu0 %v1593
  %v1661 = vpop.f32.mrb[0].mxu0
  %v1662 = vadd.f32 %v1589, %v1661
  %v1663 = vpop.f32.mrb[0].mxu0
  %1664 = vdwg.mxu0
  %v1665 = vadd.f32 %v1662, %v481
  %v1666 = vmax.f32 %v1665, 0.0
  %v1668 = vsel %vm148, %v1666, 0
  %1670 = vmatprep.subr.mxu0 0.0
  %1671 = vmatpush1.msra.mxu0 %v26
  %1672 = vmatprep.subr.mxu0 0.0
  %1673 = vmatpush1.msra.mxu0 %v27
  %1674 = vmatprep.subr.mxu0 0.0
  %1675 = vmatpush1.msra.mxu0 %v28
  %1676 = vmatprep.subr.mxu0 0.0
  %1677 = vmatpush1.msra.mxu0 %v29
  %1678 = vmatprep.subr.mxu0 0.0
  %1679 = vmatpush1.msra.mxu0 0.0
  %1680 = vmatprep.subr.mxu0 0.0
  %1681 = vmatpush1.msra.mxu0 0.0
  %1682 = vmatprep.subr.mxu0 0.0
  %1683 = vmatpush1.msra.mxu0 0.0
  %1684 = vmatprep.subr.mxu0 0.0
  %1685 = vmatpush1.msra.mxu0 0.0
  %1686 = vmatprep.subr.mxu0 0.0
  %1687 = vmatpush1.msra.mxu0 0.0
  %1688 = vmatprep.subr.mxu0 0.0
  %1689 = vmatpush1.msra.mxu0 0.0
  %1690 = vmatprep.subr.mxu0 0.0
  %1691 = vmatpush1.msra.mxu0 0.0
  %1692 = vmatprep.subr.mxu0 0.0
  %1693 = vmatpush1.msra.mxu0 0.0
  %1694 = vmatprep.subr.mxu0 0.0
  %1695 = vmatpush1.msra.mxu0 0.0
  %1696 = vmatprep.subr.mxu0 0.0
  %1697 = vmatpush1.msra.mxu0 0.0
  %1698 = vmatprep.subr.mxu0 0.0
  %1699 = vmatpush1.msra.mxu0 0.0
  %1700 = vmatprep.subr.mxu0 0.0
  %1701 = vmatpush1.msra.mxu0 0.0
  %1702 = vmatprep.subr.mxu0 0.0
  %1703 = vmatpush1.msra.mxu0 0.0
  %1704 = vmatprep.subr.mxu0 0.0
  %1705 = vmatpush1.msra.mxu0 0.0
  %1706 = vmatprep.subr.mxu0 0.0
  %1707 = vmatpush1.msra.mxu0 0.0
  %1708 = vmatprep.subr.mxu0 0.0
  %1709 = vmatpush1.msra.mxu0 0.0
  %1710 = vmatprep.subr.mxu0 0.0
  %1711 = vmatpush1.msra.mxu0 0.0
  %1712 = vmatprep.subr.mxu0 0.0
  %1713 = vmatpush1.msra.mxu0 0.0
  %1714 = vmatprep.subr.mxu0 0.0
  %1715 = vmatpush1.msra.mxu0 0.0
  %1716 = vmatprep.subr.mxu0 0.0
  %1717 = vmatpush1.msra.mxu0 0.0
  %1718 = vmatprep.subr.mxu0 0.0
  %1719 = vmatpush1.msra.mxu0 0.0
  %1720 = vmatprep.subr.mxu0 0.0
  %1721 = vmatpush1.msra.mxu0 0.0
  %1722 = vmatprep.subr.mxu0 0.0
  %1723 = vmatpush1.msra.mxu0 0.0
  %1724 = vmatprep.subr.mxu0 0.0
  %1725 = vmatpush1.msra.mxu0 0.0
  %1726 = vmatprep.subr.mxu0 0.0
  %1727 = vmatpush1.msra.mxu0 0.0
  %1728 = vmatprep.subr.mxu0 0.0
  %1729 = vmatpush1.msra.mxu0 0.0
  %1730 = vmatprep.subr.mxu0 0.0
  %1731 = vmatpush1.msra.mxu0 0.0
  %1732 = vmatprep.subr.mxu0 0.0
  %1733 = vmatpush1.msra.mxu0 0.0
  %1734 = vmatprep.mubr.f32.mxu0 0.0
  %1735 = vmatmul.mubr.f32.gmra.mrb[0].mxu0 %v1668
  %v1736 = vpop.f32.mrb[0].mxu0
  %v1737 = vadd.f32 %v487, %v1736
  %v1738 = vpop.f32.mrb[0].mxu0
  %1739 = vdwg.mxu0
  %v1740 = vmax.f32 %v1737, 0.0
  %v1742 = vsel %vm148, %v1740, 0
  %1744 = vmatprep.subr.mxu0 0.0
  %1745 = vmatpush1.msra.mxu0 %v31
  %1746 = vmatprep.subr.mxu0 0.0
  %1747 = vmatpush1.msra.mxu0 %v32
  %1748 = vmatprep.subr.mxu0 0.0
  %1749 = vmatpush1.msra.mxu0 %v33
  %1750 = vmatprep.subr.mxu0 0.0
  %1751 = vmatpush1.msra.mxu0 %v34
  %1752 = vmatprep.subr.mxu0 0.0
  %1753 = vmatpush1.msra.mxu0 0.0
  %1754 = vmatprep.subr.mxu0 0.0
  %1755 = vmatpush1.msra.mxu0 0.0
  %1756 = vmatprep.subr.mxu0 0.0
  %1757 = vmatpush1.msra.mxu0 0.0
  %1758 = vmatprep.subr.mxu0 0.0
  %1759 = vmatpush1.msra.mxu0 0.0
  %1760 = vmatprep.subr.mxu0 0.0
  %1761 = vmatpush1.msra.mxu0 0.0
  %1762 = vmatprep.subr.mxu0 0.0
  %1763 = vmatpush1.msra.mxu0 0.0
  %1764 = vmatprep.subr.mxu0 0.0
  %1765 = vmatpush1.msra.mxu0 0.0
  %1766 = vmatprep.subr.mxu0 0.0
  %1767 = vmatpush1.msra.mxu0 0.0
  %1768 = vmatprep.subr.mxu0 0.0
  %1769 = vmatpush1.msra.mxu0 0.0
  %1770 = vmatprep.subr.mxu0 0.0
  %1771 = vmatpush1.msra.mxu0 0.0
  %1772 = vmatprep.subr.mxu0 0.0
  %1773 = vmatpush1.msra.mxu0 0.0
  %1774 = vmatprep.subr.mxu0 0.0
  %1775 = vmatpush1.msra.mxu0 0.0
  %1776 = vmatprep.subr.mxu0 0.0
  %1777 = vmatpush1.msra.mxu0 0.0
  %1778 = vmatprep.subr.mxu0 0.0
  %1779 = vmatpush1.msra.mxu0 0.0
  %1780 = vmatprep.subr.mxu0 0.0
  %1781 = vmatpush1.msra.mxu0 0.0
  %1782 = vmatprep.subr.mxu0 0.0
  %1783 = vmatpush1.msra.mxu0 0.0
  %1784 = vmatprep.subr.mxu0 0.0
  %1785 = vmatpush1.msra.mxu0 0.0
  %1786 = vmatprep.subr.mxu0 0.0
  %1787 = vmatpush1.msra.mxu0 0.0
  %1788 = vmatprep.subr.mxu0 0.0
  %1789 = vmatpush1.msra.mxu0 0.0
  %1790 = vmatprep.subr.mxu0 0.0
  %1791 = vmatpush1.msra.mxu0 0.0
  %1792 = vmatprep.subr.mxu0 0.0
  %1793 = vmatpush1.msra.mxu0 0.0
  %1794 = vmatprep.subr.mxu0 0.0
  %1795 = vmatpush1.msra.mxu0 0.0
  %1796 = vmatprep.subr.mxu0 0.0
  %1797 = vmatpush1.msra.mxu0 0.0
  %1798 = vmatprep.subr.mxu0 0.0
  %1799 = vmatpush1.msra.mxu0 0.0
  %1800 = vmatprep.subr.mxu0 0.0
  %1801 = vmatpush1.msra.mxu0 0.0
  %1802 = vmatprep.subr.mxu0 0.0
  %1803 = vmatpush1.msra.mxu0 0.0
  %1804 = vmatprep.subr.mxu0 0.0
  %1805 = vmatpush1.msra.mxu0 0.0
  %1806 = vmatprep.subr.mxu0 0.0
  %1807 = vmatpush1.msra.mxu0 0.0
  %1808 = vmatprep.mubr.f32.mxu0 0.0
  %1809 = vmatmul.mubr.f32.gmra.mrb[0].mxu0 %v1742
  %v1810 = vpop.f32.mrb[0].mxu0
  %v1811 = vadd.f32 %v565, %v1810
  %v1812 = vpop.f32.mrb[0].mxu0
  %1813 = vdwg.mxu0
  %v1814 = vmax.f32 %v1811, 0.0
  %v1816 = vsel %vm47, %v1814, 0
  %1818 = vmatprep.subr.mxu0 0.0
  %1819 = vmatpush1.msra.mxu0 %v648
  %1820 = vmatprep.subr.mxu0 0.0
  %1821 = vmatpush1.msra.mxu0 0.0
  %1822 = vmatprep.subr.mxu0 0.0
  %1823 = vmatpush1.msra.mxu0 0.0
  %1824 = vmatprep.subr.mxu0 0.0
  %1825 = vmatpush1.msra.mxu0 0.0
  %1826 = vmatprep.subr.mxu0 0.0
  %1827 = vmatpush1.msra.mxu0 0.0
  %1828 = vmatprep.subr.mxu0 0.0
  %1829 = vmatpush1.msra.mxu0 0.0
  %1830 = vmatprep.subr.mxu0 0.0
  %1831 = vmatpush1.msra.mxu0 0.0
  %1832 = vmatprep.subr.mxu0 0.0
  %1833 = vmatpush1.msra.mxu0 0.0
  %1834 = vmatprep.subr.mxu0 0.0
  %1835 = vmatpush1.msra.mxu0 0.0
  %1836 = vmatprep.subr.mxu0 0.0
  %1837 = vmatpush1.msra.mxu0 0.0
  %1838 = vmatprep.subr.mxu0 0.0
  %1839 = vmatpush1.msra.mxu0 0.0
  %1840 = vmatprep.subr.mxu0 0.0
  %1841 = vmatpush1.msra.mxu0 0.0
  %1842 = vmatprep.subr.mxu0 0.0
  %1843 = vmatpush1.msra.mxu0 0.0
  %1844 = vmatprep.subr.mxu0 0.0
  %1845 = vmatpush1.msra.mxu0 0.0
  %1846 = vmatprep.subr.mxu0 0.0
  %1847 = vmatpush1.msra.mxu0 0.0
  %1848 = vmatprep.subr.mxu0 0.0
  %1849 = vmatpush1.msra.mxu0 0.0
  %1850 = vmatprep.subr.mxu0 0.0
  %1851 = vmatpush1.msra.mxu0 0.0
  %1852 = vmatprep.subr.mxu0 0.0
  %1853 = vmatpush1.msra.mxu0 0.0
  %1854 = vmatprep.subr.mxu0 0.0
  %1855 = vmatpush1.msra.mxu0 0.0
  %1856 = vmatprep.subr.mxu0 0.0
  %1857 = vmatpush1.msra.mxu0 0.0
  %1858 = vmatprep.subr.mxu0 0.0
  %1859 = vmatpush1.msra.mxu0 0.0
  %1860 = vmatprep.subr.mxu0 0.0
  %1861 = vmatpush1.msra.mxu0 0.0
  %1862 = vmatprep.subr.mxu0 0.0
  %1863 = vmatpush1.msra.mxu0 0.0
  %1864 = vmatprep.subr.mxu0 0.0
  %1865 = vmatpush1.msra.mxu0 0.0
  %1866 = vmatprep.subr.mxu0 0.0
  %1867 = vmatpush1.msra.mxu0 0.0
  %1868 = vmatprep.subr.mxu0 0.0
  %1869 = vmatpush1.msra.mxu0 0.0
  %1870 = vmatprep.subr.mxu0 0.0
  %1871 = vmatpush1.msra.mxu0 0.0
  %1872 = vmatprep.subr.mxu0 0.0
  %1873 = vmatpush1.msra.mxu0 0.0
  %1874 = vmatprep.subr.mxu0 0.0
  %1875 = vmatpush1.msra.mxu0 0.0
  %1876 = vmatprep.subr.mxu0 0.0
  %1877 = vmatpush1.msra.mxu0 0.0
  %1878 = vmatprep.subr.mxu0 0.0
  %1879 = vmatpush1.msra.mxu0 0.0
  %1880 = vmatprep.subr.mxu0 0.0
  %1881 = vmatpush1.msra.mxu0 0.0
  %1882 = vmatprep.mubr.f32.mxu0 0.0
  %1883 = vmatmul.mubr.f32.gmra.mrb[0].mxu0 %v1816
  %v1884 = vpop.f32.mrb[0].mxu0
  %v1885 = vadd.f32 %v643, %v1884
  %v1886 = vpop.f32.mrb[0].mxu0
  %1887 = vdwg.mxu0
  %v1889 = vsel %vm47, %v1811, 0
  %1891 = vmatprep.subr.mxu0 0.0
  %1892 = vmatpush1.msra.mxu0 %v62
  %1893 = vmatprep.subr.mxu0 0.0
  %1894 = vmatpush1.msra.mxu0 0.0
  %1895 = vmatprep.subr.mxu0 0.0
  %1896 = vmatpush1.msra.mxu0 0.0
  %1897 = vmatprep.subr.mxu0 0.0
  %1898 = vmatpush1.msra.mxu0 0.0
  %1899 = vmatprep.subr.mxu0 0.0
  %1900 = vmatpush1.msra.mxu0 0.0
  %1901 = vmatprep.subr.mxu0 0.0
  %1902 = vmatpush1.msra.mxu0 0.0
  %1903 = vmatprep.subr.mxu0 0.0
  %1904 = vmatpush1.msra.mxu0 0.0
  %1905 = vmatprep.subr.mxu0 0.0
  %1906 = vmatpush1.msra.mxu0 0.0
  %1907 = vmatprep.subr.mxu0 0.0
  %1908 = vmatpush1.msra.mxu0 0.0
  %1909 = vmatprep.subr.mxu0 0.0
  %1910 = vmatpush1.msra.mxu0 0.0
  %1911 = vmatprep.subr.mxu0 0.0
  %1912 = vmatpush1.msra.mxu0 0.0
  %1913 = vmatprep.subr.mxu0 0.0
  %1914 = vmatpush1.msra.mxu0 0.0
  %1915 = vmatprep.subr.mxu0 0.0
  %1916 = vmatpush1.msra.mxu0 0.0
  %1917 = vmatprep.subr.mxu0 0.0
  %1918 = vmatpush1.msra.mxu0 0.0
  %1919 = vmatprep.subr.mxu0 0.0
  %1920 = vmatpush1.msra.mxu0 0.0
  %1921 = vmatprep.subr.mxu0 0.0
  %1922 = vmatpush1.msra.mxu0 0.0
  %1923 = vmatprep.subr.mxu0 0.0
  %1924 = vmatpush1.msra.mxu0 0.0
  %1925 = vmatprep.subr.mxu0 0.0
  %1926 = vmatpush1.msra.mxu0 0.0
  %1927 = vmatprep.subr.mxu0 0.0
  %1928 = vmatpush1.msra.mxu0 0.0
  %1929 = vmatprep.subr.mxu0 0.0
  %1930 = vmatpush1.msra.mxu0 0.0
  %1931 = vmatprep.subr.mxu0 0.0
  %1932 = vmatpush1.msra.mxu0 0.0
  %1933 = vmatprep.subr.mxu0 0.0
  %1934 = vmatpush1.msra.mxu0 0.0
  %1935 = vmatprep.subr.mxu0 0.0
  %1936 = vmatpush1.msra.mxu0 0.0
  %1937 = vmatprep.subr.mxu0 0.0
  %1938 = vmatpush1.msra.mxu0 0.0
  %1939 = vmatprep.subr.mxu0 0.0
  %1940 = vmatpush1.msra.mxu0 0.0
  %1941 = vmatprep.subr.mxu0 0.0
  %1942 = vmatpush1.msra.mxu0 0.0
  %1943 = vmatprep.subr.mxu0 0.0
  %1944 = vmatpush1.msra.mxu0 0.0
  %1945 = vmatprep.subr.mxu0 0.0
  %1946 = vmatpush1.msra.mxu0 0.0
  %1947 = vmatprep.subr.mxu0 0.0
  %1948 = vmatpush1.msra.mxu0 0.0
  %1949 = vmatprep.subr.mxu0 0.0
  %1950 = vmatpush1.msra.mxu0 0.0
  %1951 = vmatprep.subr.mxu0 0.0
  %1952 = vmatpush1.msra.mxu0 0.0
  %1953 = vmatprep.subr.mxu0 0.0
  %1954 = vmatpush1.msra.mxu0 0.0
  %1955 = vmatprep.mubr.f32.mxu0 0.0
  %1956 = vmatmul.mubr.f32.gmra.mrb[0].mxu0 %v1889
  %v1957 = vpop.f32.mrb[0].mxu0
  %v1958 = vadd.f32 %v46, %v1957
  %v1959 = vpop.f32.mrb[0].mxu0
  %1960 = vdwg.mxu0
  %v1962 = vrot.slane %v1958, 4
  %v1964 = vsel %vm1382, %v1380, %v1962
  %v1965 = vrot.slane %v1958, 6
  %v1967 = vsel %vm1382, %v1381, %v1965
  %v1968 = vrot.slane %v219, 2
  %v1969 = vrot.slane %v224, 2
  %v1970 = vsel %vm60, %v1968, %v1969
  %v1974 = vadd.f32 %v131, %v1968
  %v1975 = vadd.f32 %v136, %v1970
  %v1976 = vadd.f32 %v1964, %v1969
  %v1977 = vxor.u32 %v1974, 2147483648
  %v1978 = vxor.u32 %v1975, 2147483648
  %v1979 = vxor.u32 %v1976, 2147483648
  %v1980 = vmul.f32 %v1977, 1.442695
  %v1981 = vpow.pop %v1980
  %v1982 = vmul.f32 %v1978, 1.442695
  %v1983 = vpow.pop %v1982
  %v1984 = vmul.f32 %v1979, 1.442695
  %v1985 = vpow.pop %v1984
  %v1986 = vadd.f32 %v1981, 1.0
  %v1987 = vadd.f32 %v1983, 1.0
  %v1988 = vadd.f32 %v1985, 1.0
  %v1989 = vrcp.pop %v1986
  %v1990 = vmul.f32 1.0, %v1989
  %v1991 = vrcp.pop %v1987
  %v1992 = vmul.f32 1.0, %v1991
  %v1993 = vrcp.pop %v1988
  %v1994 = vmul.f32 1.0, %v1993
  %v1995 = vtanh.pop %v1974
  %v1996 = vtanh.pop %v1975
  %v1997 = vtanh.pop %v1976
  %v1998 = vmul.f32 %v1990, 0.0
  %v1999 = vmul.f32 %v1992, 0.0
  %v2000 = vmul.f32 %v1994, 0.0
  %2004 = vrot.lane.b32.xlu0 %v1995, 64
  %v2005 = vpop.permute.xlu0 %2004
  %2006 = vrot.lane.b32.xlu0 %v1996, 64
  %v2007 = vpop.permute.xlu0 %2006
  %2008 = vrot.lane.b32.xlu0 %v1997, 64
  %v2009 = vpop.permute.xlu0 %2008
  %v2013 = vmul.f32 %v1990, %v2005
  %v2014 = vmul.f32 %v1992, %v2007
  %v2015 = vmul.f32 %v1994, %v2009
  %2019 = vrot.lane.b32.xlu0 %v2013, 32
  %v2020 = vpop.permute.xlu0 %2019
  %2021 = vrot.lane.b32.xlu0 %v2014, 32
  %v2022 = vpop.permute.xlu0 %2021
  %2023 = vrot.lane.b32.xlu0 %v2015, 32
  %v2024 = vpop.permute.xlu0 %2023
  %v2028 = vadd.f32 %v1998, %v2020
  %v2029 = vadd.f32 %v1999, %v2022
  %v2030 = vadd.f32 %v2000, %v2024
  %v2031 = vtanh.pop %v2028
  %v2032 = vtanh.pop %v2029
  %v2033 = vtanh.pop %v2030
  %2037 = vrot.lane.b32.xlu0 %v2031, 64
  %v2038 = vpop.permute.xlu0 %2037
  %2039 = vrot.lane.b32.xlu0 %v2032, 64
  %v2040 = vpop.permute.xlu0 %2039
  %2041 = vrot.lane.b32.xlu0 %v2033, 64
  %v2042 = vpop.permute.xlu0 %2041
  %v2046 = vmul.f32 %v1990, %v2038
  %v2047 = vmul.f32 %v1992, %v2040
  %v2048 = vmul.f32 %v1994, %v2042
  %v2052 = vrot.slane %v2046, 6
  %v2053 = vrot.slane %v2047, 6
  %v2054 = vsel %vm391, %v2052, %v2053
  %v2055 = vrot.slane %v2048, 6
  %v2056 = vsel %vm391, %v2053, %v2055
  %2057 = vrot.lane.b32.xlu0 %v2054, 32
  %v2058 = vpop.permute.xlu0 %2057
  %2059 = vrot.lane.b32.xlu0 %v2056, 32
  %v2060 = vpop.permute.xlu0 %2059
  %v2061 = vsel %vm148, %v2058, 0
  %v2063 = vsel %vm148, %v2060, 0
  %2065 = vmatprep.subr.mxu0 0.0
  %2066 = vmatpush1.msra.mxu0 %v15
  %2067 = vmatprep.subr.mxu0 0.0
  %2068 = vmatpush1.msra.mxu0 %v16
  %2069 = vmatprep.subr.mxu0 0.0
  %2070 = vmatpush1.msra.mxu0 %v17
  %2071 = vmatprep.subr.mxu0 0.0
  %2072 = vmatpush1.msra.mxu0 %v18
  %2073 = vmatprep.subr.mxu0 0.0
  %2074 = vmatpush1.msra.mxu0 0.0
  %2075 = vmatprep.subr.mxu0 0.0
  %2076 = vmatpush1.msra.mxu0 0.0
  %2077 = vmatprep.subr.mxu0 0.0
  %2078 = vmatpush1.msra.mxu0 0.0
  %2079 = vmatprep.subr.mxu0 0.0
  %2080 = vmatpush1.msra.mxu0 0.0
  %2081 = vmatprep.subr.mxu0 0.0
  %2082 = vmatpush1.msra.mxu0 0.0
  %2083 = vmatprep.subr.mxu0 0.0
  %2084 = vmatpush1.msra.mxu0 0.0
  %2085 = vmatprep.subr.mxu0 0.0
  %2086 = vmatpush1.msra.mxu0 0.0
  %2087 = vmatprep.subr.mxu0 0.0
  %2088 = vmatpush1.msra.mxu0 0.0
  %2089 = vmatprep.subr.mxu0 0.0
  %2090 = vmatpush1.msra.mxu0 0.0
  %2091 = vmatprep.subr.mxu0 0.0
  %2092 = vmatpush1.msra.mxu0 0.0
  %2093 = vmatprep.subr.mxu0 0.0
  %2094 = vmatpush1.msra.mxu0 0.0
  %2095 = vmatprep.subr.mxu0 0.0
  %2096 = vmatpush1.msra.mxu0 0.0
  %2097 = vmatprep.subr.mxu0 0.0
  %2098 = vmatpush1.msra.mxu0 0.0
  %2099 = vmatprep.subr.mxu0 0.0
  %2100 = vmatpush1.msra.mxu0 0.0
  %2101 = vmatprep.subr.mxu0 0.0
  %2102 = vmatpush1.msra.mxu0 0.0
  %2103 = vmatprep.subr.mxu0 0.0
  %2104 = vmatpush1.msra.mxu0 0.0
  %2105 = vmatprep.subr.mxu0 0.0
  %2106 = vmatpush1.msra.mxu0 0.0
  %2107 = vmatprep.subr.mxu0 0.0
  %2108 = vmatpush1.msra.mxu0 0.0
  %2109 = vmatprep.subr.mxu0 0.0
  %2110 = vmatpush1.msra.mxu0 0.0
  %2111 = vmatprep.subr.mxu0 0.0
  %2112 = vmatpush1.msra.mxu0 0.0
  %2113 = vmatprep.subr.mxu0 0.0
  %2114 = vmatpush1.msra.mxu0 0.0
  %2115 = vmatprep.subr.mxu0 0.0
  %2116 = vmatpush1.msra.mxu0 0.0
  %2117 = vmatprep.subr.mxu0 0.0
  %2118 = vmatpush1.msra.mxu0 0.0
  %2119 = vmatprep.subr.mxu0 0.0
  %2120 = vmatpush1.msra.mxu0 0.0
  %2121 = vmatprep.subr.mxu0 0.0
  %2122 = vmatpush1.msra.mxu0 0.0
  %2123 = vmatprep.subr.mxu0 0.0
  %2124 = vmatpush1.msra.mxu0 0.0
  %2125 = vmatprep.subr.mxu0 0.0
  %2126 = vmatpush1.msra.mxu0 0.0
  %2127 = vmatprep.subr.mxu0 0.0
  %2128 = vmatpush1.msra.mxu0 0.0
  %2129 = vmatprep.mubr.f32.mxu0 0.0
  %2130 = vmatmul.mubr.f32.gmra.mrb[0].mxu0 %v2061
  %v2131 = vpop.f32.mrb[0].mxu0
  %v2132 = vpop.f32.mrb[0].mxu0
  %2133 = vmatprep.mubr.f32.mxu0 0.0
  %2134 = vmatmul.mubr.f32.gmra.mrb[0].mxu0 %v2063
  %v2135 = vpop.f32.mrb[0].mxu0
  %v2136 = vadd.f32 0.0, %v2135
  %v2137 = vpop.f32.mrb[0].mxu0
  %2138 = vdwg.mxu0
  %v2140 = vrot.slane %v2136, 2
  %v2142 = vadd.f32 %v1967, %v2140
  %v2143 = vxor.u32 %v2142, 2147483648
  %v2144 = vmul.f32 %v2143, 1.442695
  %v2145 = vpow.pop %v2144
  %v2146 = vadd.f32 %v2145, 1.0
  %v2147 = vrcp.pop %v2146
  %v2148 = vmul.f32 1.0, %v2147
  %v2149 = vtanh.pop %v2142
  %v2150 = vmul.f32 %v2148, %v2030
  %2152 = vrot.lane.b32.xlu0 %v2149, 64
  %v2153 = vpop.permute.xlu0 %2152
  %v2155 = vmul.f32 %v2148, %v2153
  %2157 = vrot.lane.b32.xlu0 %v2155, 32
  %v2158 = vpop.permute.xlu0 %2157
  %v2160 = vadd.f32 %v2150, %v2158
  %v2161 = vtanh.pop %v2160
  %2163 = vrot.lane.b32.xlu0 %v2161, 64
  %v2164 = vpop.permute.xlu0 %2163
  %v2166 = vmul.f32 %v2148, %v2164
  %v2167 = vrot.slane %v2048, 4
  %v2170 = vrot.slane %v2166, 2
  %v2172 = vsel %vm391, %v2167, %v2170
  %2173 = vset.pattern.permute.xlu0 3
  %2174 = vperm.xlu0 %2173, %v38
  %v2175 = vpop.permute.xlu0 %2174
  %v2177 = vmul.f32 %v2175, %v401
  %2179 = vrot.lane.b32.xlu0 %v2172, 32
  %v2180 = vpop.permute.xlu0 %2179
  %v2181 = vsel %vm148, %v2180, 0
  %2183 = vmatprep.subr.mxu0 0.0
  %2184 = vmatpush1.msra.mxu0 %v20
  %2185 = vmatprep.subr.mxu0 0.0
  %2186 = vmatpush1.msra.mxu0 %v21
  %2187 = vmatprep.subr.mxu0 0.0
  %2188 = vmatpush1.msra.mxu0 %v22
  %2189 = vmatprep.subr.mxu0 0.0
  %2190 = vmatpush1.msra.mxu0 %v23
  %2191 = vmatprep.subr.mxu0 0.0
  %2192 = vmatpush1.msra.mxu0 0.0
  %2193 = vmatprep.subr.mxu0 0.0
  %2194 = vmatpush1.msra.mxu0 0.0
  %2195 = vmatprep.subr.mxu0 0.0
  %2196 = vmatpush1.msra.mxu0 0.0
  %2197 = vmatprep.subr.mxu0 0.0
  %2198 = vmatpush1.msra.mxu0 0.0
  %2199 = vmatprep.subr.mxu0 0.0
  %2200 = vmatpush1.msra.mxu0 0.0
  %2201 = vmatprep.subr.mxu0 0.0
  %2202 = vmatpush1.msra.mxu0 0.0
  %2203 = vmatprep.subr.mxu0 0.0
  %2204 = vmatpush1.msra.mxu0 0.0
  %2205 = vmatprep.subr.mxu0 0.0
  %2206 = vmatpush1.msra.mxu0 0.0
  %2207 = vmatprep.subr.mxu0 0.0
  %2208 = vmatpush1.msra.mxu0 0.0
  %2209 = vmatprep.subr.mxu0 0.0
  %2210 = vmatpush1.msra.mxu0 0.0
  %2211 = vmatprep.subr.mxu0 0.0
  %2212 = vmatpush1.msra.mxu0 0.0
  %2213 = vmatprep.subr.mxu0 0.0
  %2214 = vmatpush1.msra.mxu0 0.0
  %2215 = vmatprep.subr.mxu0 0.0
  %2216 = vmatpush1.msra.mxu0 0.0
  %2217 = vmatprep.subr.mxu0 0.0
  %2218 = vmatpush1.msra.mxu0 0.0
  %2219 = vmatprep.subr.mxu0 0.0
  %2220 = vmatpush1.msra.mxu0 0.0
  %2221 = vmatprep.subr.mxu0 0.0
  %2222 = vmatpush1.msra.mxu0 0.0
  %2223 = vmatprep.subr.mxu0 0.0
  %2224 = vmatpush1.msra.mxu0 0.0
  %2225 = vmatprep.subr.mxu0 0.0
  %2226 = vmatpush1.msra.mxu0 0.0
  %2227 = vmatprep.subr.mxu0 0.0
  %2228 = vmatpush1.msra.mxu0 0.0
  %2229 = vmatprep.subr.mxu0 0.0
  %2230 = vmatpush1.msra.mxu0 0.0
  %2231 = vmatprep.subr.mxu0 0.0
  %2232 = vmatpush1.msra.mxu0 0.0
  %2233 = vmatprep.subr.mxu0 0.0
  %2234 = vmatpush1.msra.mxu0 0.0
  %2235 = vmatprep.subr.mxu0 0.0
  %2236 = vmatpush1.msra.mxu0 0.0
  %2237 = vmatprep.subr.mxu0 0.0
  %2238 = vmatpush1.msra.mxu0 0.0
  %2239 = vmatprep.subr.mxu0 0.0
  %2240 = vmatpush1.msra.mxu0 0.0
  %2241 = vmatprep.subr.mxu0 0.0
  %2242 = vmatpush1.msra.mxu0 0.0
  %2243 = vmatprep.subr.mxu0 0.0
  %2244 = vmatpush1.msra.mxu0 0.0
  %2245 = vmatprep.subr.mxu0 0.0
  %2246 = vmatpush1.msra.mxu0 0.0
  %2247 = vmatprep.mubr.f32.mxu0 0.0
  %2248 = vmatmul.mubr.f32.gmra.mrb[0].mxu0 %v2181
  %v2249 = vpop.f32.mrb[0].mxu0
  %v2250 = vadd.f32 %v2177, %v2249
  %v2251 = vpop.f32.mrb[0].mxu0
  %2252 = vdwg.mxu0
  %v2253 = vadd.f32 %v2250, %v481
  %v2254 = vmax.f32 %v2253, 0.0
  %v2256 = vsel %vm148, %v2254, 0
  %2258 = vmatprep.subr.mxu0 0.0
  %2259 = vmatpush1.msra.mxu0 %v26
  %2260 = vmatprep.subr.mxu0 0.0
  %2261 = vmatpush1.msra.mxu0 %v27
  %2262 = vmatprep.subr.mxu0 0.0
  %2263 = vmatpush1.msra.mxu0 %v28
  %2264 = vmatprep.subr.mxu0 0.0
  %2265 = vmatpush1.msra.mxu0 %v29
  %2266 = vmatprep.subr.mxu0 0.0
  %2267 = vmatpush1.msra.mxu0 0.0
  %2268 = vmatprep.subr.mxu0 0.0
  %2269 = vmatpush1.msra.mxu0 0.0
  %2270 = vmatprep.subr.mxu0 0.0
  %2271 = vmatpush1.msra.mxu0 0.0
  %2272 = vmatprep.subr.mxu0 0.0
  %2273 = vmatpush1.msra.mxu0 0.0
  %2274 = vmatprep.subr.mxu0 0.0
  %2275 = vmatpush1.msra.mxu0 0.0
  %2276 = vmatprep.subr.mxu0 0.0
  %2277 = vmatpush1.msra.mxu0 0.0
  %2278 = vmatprep.subr.mxu0 0.0
  %2279 = vmatpush1.msra.mxu0 0.0
  %2280 = vmatprep.subr.mxu0 0.0
  %2281 = vmatpush1.msra.mxu0 0.0
  %2282 = vmatprep.subr.mxu0 0.0
  %2283 = vmatpush1.msra.mxu0 0.0
  %2284 = vmatprep.subr.mxu0 0.0
  %2285 = vmatpush1.msra.mxu0 0.0
  %2286 = vmatprep.subr.mxu0 0.0
  %2287 = vmatpush1.msra.mxu0 0.0
  %2288 = vmatprep.subr.mxu0 0.0
  %2289 = vmatpush1.msra.mxu0 0.0
  %2290 = vmatprep.subr.mxu0 0.0
  %2291 = vmatpush1.msra.mxu0 0.0
  %2292 = vmatprep.subr.mxu0 0.0
  %2293 = vmatpush1.msra.mxu0 0.0
  %2294 = vmatprep.subr.mxu0 0.0
  %2295 = vmatpush1.msra.mxu0 0.0
  %2296 = vmatprep.subr.mxu0 0.0
  %2297 = vmatpush1.msra.mxu0 0.0
  %2298 = vmatprep.subr.mxu0 0.0
  %2299 = vmatpush1.msra.mxu0 0.0
  %2300 = vmatprep.subr.mxu0 0.0
  %2301 = vmatpush1.msra.mxu0 0.0
  %2302 = vmatprep.subr.mxu0 0.0
  %2303 = vmatpush1.msra.mxu0 0.0
  %2304 = vmatprep.subr.mxu0 0.0
  %2305 = vmatpush1.msra.mxu0 0.0
  %2306 = vmatprep.subr.mxu0 0.0
  %2307 = vmatpush1.msra.mxu0 0.0
  %2308 = vmatprep.subr.mxu0 0.0
  %2309 = vmatpush1.msra.mxu0 0.0
  %2310 = vmatprep.subr.mxu0 0.0
  %2311 = vmatpush1.msra.mxu0 0.0
  %2312 = vmatprep.subr.mxu0 0.0
  %2313 = vmatpush1.msra.mxu0 0.0
  %2314 = vmatprep.subr.mxu0 0.0
  %2315 = vmatpush1.msra.mxu0 0.0
  %2316 = vmatprep.subr.mxu0 0.0
  %2317 = vmatpush1.msra.mxu0 0.0
  %2318 = vmatprep.subr.mxu0 0.0
  %2319 = vmatpush1.msra.mxu0 0.0
  %2320 = vmatprep.subr.mxu0 0.0
  %2321 = vmatpush1.msra.mxu0 0.0
  %2322 = vmatprep.mubr.f32.mxu0 0.0
  %2323 = vmatmul.mubr.f32.gmra.mrb[0].mxu0 %v2256
  %v2324 = vpop.f32.mrb[0].mxu0
  %v2325 = vadd.f32 %v487, %v2324
  %v2326 = vpop.f32.mrb[0].mxu0
  %2327 = vdwg.mxu0
  %v2328 = vmax.f32 %v2325, 0.0
  %v2330 = vsel %vm148, %v2328, 0
  %2332 = vmatprep.subr.mxu0 0.0
  %2333 = vmatpush1.msra.mxu0 %v31
  %2334 = vmatprep.subr.mxu0 0.0
  %2335 = vmatpush1.msra.mxu0 %v32
  %2336 = vmatprep.subr.mxu0 0.0
  %2337 = vmatpush1.msra.mxu0 %v33
  %2338 = vmatprep.subr.mxu0 0.0
  %2339 = vmatpush1.msra.mxu0 %v34
  %2340 = vmatprep.subr.mxu0 0.0
  %2341 = vmatpush1.msra.mxu0 0.0
  %2342 = vmatprep.subr.mxu0 0.0
  %2343 = vmatpush1.msra.mxu0 0.0
  %2344 = vmatprep.subr.mxu0 0.0
  %2345 = vmatpush1.msra.mxu0 0.0
  %2346 = vmatprep.subr.mxu0 0.0
  %2347 = vmatpush1.msra.mxu0 0.0
  %2348 = vmatprep.subr.mxu0 0.0
  %2349 = vmatpush1.msra.mxu0 0.0
  %2350 = vmatprep.subr.mxu0 0.0
  %2351 = vmatpush1.msra.mxu0 0.0
  %2352 = vmatprep.subr.mxu0 0.0
  %2353 = vmatpush1.msra.mxu0 0.0
  %2354 = vmatprep.subr.mxu0 0.0
  %2355 = vmatpush1.msra.mxu0 0.0
  %2356 = vmatprep.subr.mxu0 0.0
  %2357 = vmatpush1.msra.mxu0 0.0
  %2358 = vmatprep.subr.mxu0 0.0
  %2359 = vmatpush1.msra.mxu0 0.0
  %2360 = vmatprep.subr.mxu0 0.0
  %2361 = vmatpush1.msra.mxu0 0.0
  %2362 = vmatprep.subr.mxu0 0.0
  %2363 = vmatpush1.msra.mxu0 0.0
  %2364 = vmatprep.subr.mxu0 0.0
  %2365 = vmatpush1.msra.mxu0 0.0
  %2366 = vmatprep.subr.mxu0 0.0
  %2367 = vmatpush1.msra.mxu0 0.0
  %2368 = vmatprep.subr.mxu0 0.0
  %2369 = vmatpush1.msra.mxu0 0.0
  %2370 = vmatprep.subr.mxu0 0.0
  %2371 = vmatpush1.msra.mxu0 0.0
  %2372 = vmatprep.subr.mxu0 0.0
  %2373 = vmatpush1.msra.mxu0 0.0
  %2374 = vmatprep.subr.mxu0 0.0
  %2375 = vmatpush1.msra.mxu0 0.0
  %2376 = vmatprep.subr.mxu0 0.0
  %2377 = vmatpush1.msra.mxu0 0.0
  %2378 = vmatprep.subr.mxu0 0.0
  %2379 = vmatpush1.msra.mxu0 0.0
  %2380 = vmatprep.subr.mxu0 0.0
  %2381 = vmatpush1.msra.mxu0 0.0
  %2382 = vmatprep.subr.mxu0 0.0
  %2383 = vmatpush1.msra.mxu0 0.0
  %2384 = vmatprep.subr.mxu0 0.0
  %2385 = vmatpush1.msra.mxu0 0.0
  %2386 = vmatprep.subr.mxu0 0.0
  %2387 = vmatpush1.msra.mxu0 0.0
  %2388 = vmatprep.subr.mxu0 0.0
  %2389 = vmatpush1.msra.mxu0 0.0
  %2390 = vmatprep.subr.mxu0 0.0
  %2391 = vmatpush1.msra.mxu0 0.0
  %2392 = vmatprep.subr.mxu0 0.0
  %2393 = vmatpush1.msra.mxu0 0.0
  %2394 = vmatprep.subr.mxu0 0.0
  %2395 = vmatpush1.msra.mxu0 0.0
  %2396 = vmatprep.mubr.f32.mxu0 0.0
  %2397 = vmatmul.mubr.f32.gmra.mrb[0].mxu0 %v2330
  %v2398 = vpop.f32.mrb[0].mxu0
  %v2399 = vadd.f32 %v565, %v2398
  %v2400 = vpop.f32.mrb[0].mxu0
  %2401 = vdwg.mxu0
  %v2402 = vmax.f32 %v2399, 0.0
  %v2404 = vsel %vm47, %v2402, 0
  %2406 = vmatprep.subr.mxu0 0.0
  %2407 = vmatpush1.msra.mxu0 %v648
  %2408 = vmatprep.subr.mxu0 0.0
  %2409 = vmatpush1.msra.mxu0 0.0
  %2410 = vmatprep.subr.mxu0 0.0
  %2411 = vmatpush1.msra.mxu0 0.0
  %2412 = vmatprep.subr.mxu0 0.0
  %2413 = vmatpush1.msra.mxu0 0.0
  %2414 = vmatprep.subr.mxu0 0.0
  %2415 = vmatpush1.msra.mxu0 0.0
  %2416 = vmatprep.subr.mxu0 0.0
  %2417 = vmatpush1.msra.mxu0 0.0
  %2418 = vmatprep.subr.mxu0 0.0
  %2419 = vmatpush1.msra.mxu0 0.0
  %2420 = vmatprep.subr.mxu0 0.0
  %2421 = vmatpush1.msra.mxu0 0.0
  %2422 = vmatprep.subr.mxu0 0.0
  %2423 = vmatpush1.msra.mxu0 0.0
  %2424 = vmatprep.subr.mxu0 0.0
  %2425 = vmatpush1.msra.mxu0 0.0
  %2426 = vmatprep.subr.mxu0 0.0
  %2427 = vmatpush1.msra.mxu0 0.0
  %2428 = vmatprep.subr.mxu0 0.0
  %2429 = vmatpush1.msra.mxu0 0.0
  %2430 = vmatprep.subr.mxu0 0.0
  %2431 = vmatpush1.msra.mxu0 0.0
  %2432 = vmatprep.subr.mxu0 0.0
  %2433 = vmatpush1.msra.mxu0 0.0
  %2434 = vmatprep.subr.mxu0 0.0
  %2435 = vmatpush1.msra.mxu0 0.0
  %2436 = vmatprep.subr.mxu0 0.0
  %2437 = vmatpush1.msra.mxu0 0.0
  %2438 = vmatprep.subr.mxu0 0.0
  %2439 = vmatpush1.msra.mxu0 0.0
  %2440 = vmatprep.subr.mxu0 0.0
  %2441 = vmatpush1.msra.mxu0 0.0
  %2442 = vmatprep.subr.mxu0 0.0
  %2443 = vmatpush1.msra.mxu0 0.0
  %2444 = vmatprep.subr.mxu0 0.0
  %2445 = vmatpush1.msra.mxu0 0.0
  %2446 = vmatprep.subr.mxu0 0.0
  %2447 = vmatpush1.msra.mxu0 0.0
  %2448 = vmatprep.subr.mxu0 0.0
  %2449 = vmatpush1.msra.mxu0 0.0
  %2450 = vmatprep.subr.mxu0 0.0
  %2451 = vmatpush1.msra.mxu0 0.0
  %2452 = vmatprep.subr.mxu0 0.0
  %2453 = vmatpush1.msra.mxu0 0.0
  %2454 = vmatprep.subr.mxu0 0.0
  %2455 = vmatpush1.msra.mxu0 0.0
  %2456 = vmatprep.subr.mxu0 0.0
  %2457 = vmatpush1.msra.mxu0 0.0
  %2458 = vmatprep.subr.mxu0 0.0
  %2459 = vmatpush1.msra.mxu0 0.0
  %2460 = vmatprep.subr.mxu0 0.0
  %2461 = vmatpush1.msra.mxu0 0.0
  %2462 = vmatprep.subr.mxu0 0.0
  %2463 = vmatpush1.msra.mxu0 0.0
  %2464 = vmatprep.subr.mxu0 0.0
  %2465 = vmatpush1.msra.mxu0 0.0
  %2466 = vmatprep.subr.mxu0 0.0
  %2467 = vmatpush1.msra.mxu0 0.0
  %2468 = vmatprep.subr.mxu0 0.0
  %2469 = vmatpush1.msra.mxu0 0.0
  %2470 = vmatprep.mubr.f32.mxu0 0.0
  %2471 = vmatmul.mubr.f32.gmra.mrb[0].mxu0 %v2404
  %v2472 = vpop.f32.mrb[0].mxu0
  %v2473 = vadd.f32 %v643, %v2472
  %v2474 = vpop.f32.mrb[0].mxu0
  %2475 = vdwg.mxu0
  %2477 = vrot.lane.b32.xlu0 %v1301, 1
  %v2478 = vpop.permute.xlu0 %2477
  %2481 = vrot.lane.b32.xlu0 %v1885, 2
  %v2482 = vpop.permute.xlu0 %2481
  %2485 = vrot.lane.b32.xlu0 %v2473, 3
  %v2486 = vpop.permute.xlu0 %2485
  %vm2488 = vcmask 7168
  %v2489 = vsel %vm2488, %v717, %v2478
  %vm2490 = vcmask 15360
  %v2491 = vsel %vm2490, %v2489, %v2482
  %vm2492 = vcmask 23552
  %v2493 = vsel %vm2492, %v2491, %v2486
  %vm2494 = vcmask 27648
  %2495 = vst.msk [vmem:[%s3] sm:$0xf] %vm2494, %v2493
  // Predicated region
  $region14: #{model_forward.1} parent=0 // pred_check
    _
  $region15: #{model_forward.1} parent=0 // pred_check_branch
    %2497 = sbr.rel (0) target = $region17
  $region16: #{model_forward.1} parent=0 // pred_region
    _
  $region17: #{model_forward.1} parent=0 // pred_fallthru
    _
  // Predicated region
  $region18: #{model_forward.1} parent=0 // pred_check
    _
  $region19: #{model_forward.1} parent=0 // pred_check_branch
    %2499 = sbr.rel (0) target = $region21
  $region20: #{model_forward.1} parent=0 // pred_region
    _
  $region21: #{model_forward.1} parent=0 // pred_fallthru
    _

</llo_original>
